<compile_context>
chip_gen: v7x
topology: tpu7x:2x2x1
jax: 0.10.0
libtpu: 0.0.40
codegen_flags: <defaults>
</compile_context>

<pallas_src>
import jax
import jax.numpy as jnp
from jax import lax
from jax.experimental import pallas as pl
from jax.experimental.pallas import tpu as pltpu

TEMP = 0.07            # self.temp in the PyTorch module
INV_TEMP = 1.0 / TEMP
EPS = 1e-12            # F.normalize eps


def blip2cir_kernel(tar_ref, qhid_ref, w_ref, b_ref,
                    qfeat_ref, tfeat_ref, loss_ref,
                    cols_sc, rowacc_sc, diagacc_sc):
    """Grid: (num_query_blocks,) marked "arbitrary".

    tar_ref   : (B, E)  f32   target features (resident across the grid)
    qhid_ref  : (TB, H) bf16  Qformer CLS hidden state, tiled over query rows
    w_ref     : (H, E)  bf16  text_proj weight in x @ W layout (resident)
    b_ref     : (1, E)  f32   text_proj bias
    qfeat_ref : (TB, E) f32   out: normalized query features (tiled)
    tfeat_ref : (B, E)  f32   out: normalized target features (resident,
                              also reused in-kernel as the t_feat buffer)
    loss_ref  : (1,)    f32   out (SMEM): scalar contrastive loss
    cols_sc   : (1, B)  f32   VMEM: running per-column sum of exp(logit - C)
    rowacc_sc : (1,)    f32   SMEM: running sum of row LSE
    diagacc_sc: (1,)    f32   SMEM: running sum of diagonal logits
    """
    step = pl.program_id(0)
    nsteps = pl.num_programs(0)
    tb = qhid_ref.shape[0]
    full_b = tfeat_ref.shape[0]

    # ---- step 0: normalize all targets once; zero the accumulators ----
    @pl.when(step == 0)
    def _init():
        tar = tar_ref[...]
        inv_t = lax.rsqrt(
            jnp.maximum(jnp.sum(tar * tar, axis=-1, keepdims=True), EPS * EPS))
        tfeat_ref[...] = tar * inv_t
        cols_sc[...] = jnp.zeros_like(cols_sc)
        rowacc_sc[0] = jnp.float32(0.0)
        diagacc_sc[0] = jnp.float32(0.0)

    # ---- text projection for this query block: bf16 MXU, f32 accumulate ----
    q = jnp.dot(qhid_ref[...], w_ref[...],
                preferred_element_type=jnp.float32) + b_ref[...]
    inv_q = lax.rsqrt(
        jnp.maximum(jnp.sum(q * q, axis=-1, keepdims=True), EPS * EPS))
    q_feat = q * inv_q
    qfeat_ref[...] = q_feat

    # ---- contrastive logits: temp folded into q, no transpose of t_feat ----
    t_feat = tfeat_ref[...]                      # normalized targets (resident)
    q_scaled = q_feat * INV_TEMP
    logits = lax.dot_general(                    # (TB, B), f32
        q_scaled, t_feat,
        dimension_numbers=(((1,), (1,)), ((), ())),
        preferred_element_type=jnp.float32)

    # i2t side: row-wise logsumexp, accumulated over query blocks.
    row_m = jnp.max(logits, axis=-1, keepdims=True)          # (TB, 1)
    p = jnp.exp(logits - row_m)                               # single EUP pass
    row_lse = row_m + jnp.log(jnp.sum(p, axis=-1, keepdims=True))
    rowacc_sc[0] += jnp.sum(row_lse)

    # diagonal terms logits[i, step*TB + i], computed directly on the VPU.
    row_start = pl.multiple_of(step * tb, tb)
    t_blk = tfeat_ref[pl.ds(row_start, tb), :]
    diag = jnp.sum(q_scaled * t_blk, axis=-1, keepdims=True)  # (TB, 1)
    diagacc_sc[0] += jnp.sum(diag)

    # t2i side: column sum-exp with constant shift C = 1/temp.
    # Safe because both operands are unit-normalized => |logit| <= 1/temp.
    # Reuses p: exp(logit - C) = p * exp(row_m - C)   (VPU mul, no 2nd exp).
    w_col = jnp.exp(row_m - INV_TEMP)                         # (TB, 1)
    cols_sc[...] += jnp.sum(p * w_col, axis=0, keepdims=True)

    # ---- last step: combine into the symmetric InfoNCE loss ----
    @pl.when(step == nsteps - 1)
    def _finalize():
        col_lse = INV_TEMP + jnp.log(cols_sc[...])            # (1, B)
        inv_b = 1.0 / full_b
        mean_row_lse = rowacc_sc[0] * inv_b
        mean_col_lse = jnp.sum(col_lse) * inv_b
        mean_diag = diagacc_sc[0] * inv_b
        loss_ref[0] = 0.5 * (mean_row_lse + mean_col_lse) - mean_diag


def _pick_block_q(batch):
    """Single grid step for small/medium batches; 256-row tiles otherwise."""
    if batch <= 1024:
        return batch
    for cand in (256, 128, 64, 32, 16, 8):
        if batch % cand == 0:
            return cand
    return batch


def blip2cir_forward(tar_feat, query_hidden, w_text_he, b_text, *, block_q=None):
    """Projection + normalization + symmetric InfoNCE loss, fused on TPU.

    tar_feat     : (B, E) f32   target image features (pre-normalization)
    query_hidden : (B, H)       Qformer CLS hidden state (cast to bf16 once)
    w_text_he    : (H, E)       text_proj weight, pre-transposed at init time
    b_text       : (E,)  f32    text_proj bias
    returns (query_feat (B,E) f32, tar_img_feat (B,E) f32, loss scalar)
    """
    B, E = tar_feat.shape
    H = query_hidden.shape[1]
    if block_q is None:
        block_q = _pick_block_q(B)
    block_q = min(block_q, B)
    assert B % block_q == 0, "batch must be a multiple of the query block"
    nq = B // block_q

    tar = tar_feat.astype(jnp.float32)
    qhid = query_hidden.astype(jnp.bfloat16)       # MXU-native input
    w = w_text_he.astype(jnp.bfloat16)             # MXU-native weight
    b = b_text.reshape(1, E).astype(jnp.float32)

    grid_spec = pltpu.PrefetchScalarGridSpec(
        num_scalar_prefetch=0,
        grid=(nq,),
        in_specs=[
            pl.BlockSpec((B, E), lambda i: (0, 0)),        # targets (resident)
            pl.BlockSpec((block_q, H), lambda i: (i, 0)),  # qhid tile
            pl.BlockSpec((H, E), lambda i: (0, 0)),        # weight (resident)
            pl.BlockSpec((1, E), lambda i: (0, 0)),        # bias
        ],
        out_specs=(
            pl.BlockSpec((block_q, E), lambda i: (i, 0)),  # query_feat tile
            pl.BlockSpec((B, E), lambda i: (0, 0)),        # tar_img_feat
            pl.BlockSpec(memory_space=pltpu.MemorySpace.SMEM),  # scalar loss
        ),
        scratch_shapes=[
            pltpu.VMEM((1, B), jnp.float32),   # running column sum-exp
            pltpu.SMEM((1,), jnp.float32),     # sum of row LSE
            pltpu.SMEM((1,), jnp.float32),     # sum of diagonal logits
        ],
    )

    # Raise the scoped-VMEM limit only when the resident footprint demands it
    # (v5e defaults to 16 MiB; v7x physical VMEM is 64 MiB so stay modest).
    est = (2 * block_q * H * 2      # qhid tile, double-buffered, bf16
           + 2 * block_q * E * 4    # qfeat tile, double-buffered, f32
           + 2 * B * E * 4          # resident tar (in) + tfeat (out), f32
           + H * E * 2              # resident weight, bf16
           + E * 4 + B * 4)         # bias + column scratch
    vmem_limit = None
    if est * 2 > 16 * 1024 * 1024:
        vmem_limit = min(est * 2, 100 * 1024 * 1024)

    q_feat, t_feat, loss = pl.pallas_call(
        blip2cir_kernel,
        grid_spec=grid_spec,
        out_shape=(
            jax.ShapeDtypeStruct((B, E), jnp.float32),
            jax.ShapeDtypeStruct((B, E), jnp.float32),
            jax.ShapeDtypeStruct((1,), jnp.float32),
        ),
        compiler_params=pltpu.CompilerParams(
            dimension_semantics=("arbitrary",),    # loss accumulates across blocks
            vmem_limit_bytes=vmem_limit),
    )(tar, qhid, w, b)
    return q_feat, t_feat, loss[0]


def _reference(tar_feat, query_hidden, w_text_he, b_text):
    """Plain-JAX reference of the same math (PyTorch semantics)."""
    t = tar_feat / jnp.maximum(
        jnp.linalg.norm(tar_feat, axis=-1, keepdims=True), EPS)
    q = query_hidden.astype(jnp.float32) @ w_text_he.astype(jnp.float32) + b_text
    q = q / jnp.maximum(jnp.linalg.norm(q, axis=-1, keepdims=True), EPS)
    logits = (q @ t.T) / TEMP
    labels = jnp.arange(q.shape[0])
    logp_i2t = jax.nn.log_softmax(logits, axis=-1)
    logp_t2i = jax.nn.log_softmax(logits.T, axis=-1)
    loss = -0.5 * (jnp.mean(logp_i2t[labels, labels])
                   + jnp.mean(logp_t2i[labels, labels]))
    return q, t, loss


if __name__ == "__main__":
    # Small but lane-dense shapes consistent with the module's forward:
    #   contrastive batch B=128, Qformer hidden (text_width) H=256,
    #   embed_dim E=128 — last dims multiples of 128, rows multiples of 8.
    # With B<=1024 the kernel runs as a single grid step (no pipeline overhead).
    B, H, E = 128, 256, 128
    key = jax.random.PRNGKey(0)
    k_tar, k_qh, k_w, k_b = jax.random.split(key, 4)

    tar_feat = jax.random.normal(k_tar, (B, E), dtype=jnp.float32)
    # Qformer CLS hidden state + text_proj params; weight stored pre-transposed
    # to (H, E) once at init so the hot path never pays an XLA transpose.
    query_hidden = jax.random.normal(
        k_qh, (B, H), dtype=jnp.float32).astype(jnp.bfloat16)
    w_text_he = (0.02 * jax.random.normal(
        k_w, (H, E), dtype=jnp.float32)).astype(jnp.bfloat16)
    b_text = 0.01 * jax.random.normal(k_b, (E,), dtype=jnp.float32)

    q_feat, t_feat, loss = blip2cir_forward(
        tar_feat, query_hidden, w_text_he, b_text)
    jax.block_until_ready((q_feat, t_feat, loss))

    # Sanity check against the plain-JAX reference.
    q_ref, t_ref, loss_ref = _reference(tar_feat, query_hidden, w_text_he, b_text)
    assert jnp.allclose(q_feat, q_ref, atol=2e-3, rtol=2e-3)
    assert jnp.allclose(t_feat, t_ref, atol=2e-3, rtol=2e-3)
    assert jnp.allclose(loss, loss_ref, atol=2e-2, rtol=2e-2)

    print("KERNEL_OK")
</pallas_src>

<mosaic_0001>
module attributes {stable_mosaic.version = 11 : i64} {
  func.func @blip2cir_kernel(%arg0: i32, %arg1: memref<128x128xf32, #tpu.memory_space<vmem>>, %arg2: memref<128x256xbf16, #tpu.memory_space<vmem>>, %arg3: memref<256x128xbf16, #tpu.memory_space<vmem>>, %arg4: memref<1x128xf32, #tpu.memory_space<vmem>>, %arg5: memref<128x128xf32, #tpu.memory_space<vmem>>, %arg6: memref<128x128xf32, #tpu.memory_space<vmem>>, %arg7: memref<1xf32, #tpu.memory_space<smem>>, %arg8: memref<1x128xf32, #tpu.memory_space<vmem>>, %arg9: memref<1xf32, #tpu.memory_space<smem>>, %arg10: memref<1xf32, #tpu.memory_space<smem>>) attributes {dimension_semantics = [#tpu.dimension_semantics<arbitrary>], iteration_bounds = array<i64: 1>, scalar_prefetch = 0 : i64, scratch_operands = 3 : i64, tpu.core_type = #tpu.core_type<tc>, window_params = [{pipeline_mode = #tpu.pipeline_mode<synchronous>, transform_indices = @transform_0, window_bounds = array<i64: 128, 128>}, {transform_indices = @transform_1, window_bounds = array<i64: 128, 256>}, {pipeline_mode = #tpu.pipeline_mode<synchronous>, transform_indices = @transform_2, window_bounds = array<i64: 256, 128>}, {pipeline_mode = #tpu.pipeline_mode<synchronous>, transform_indices = @transform_3, window_bounds = array<i64: 1, 128>}, {transform_indices = @transform_4, window_bounds = array<i64: 128, 128>}, {pipeline_mode = #tpu.pipeline_mode<synchronous>, transform_indices = @transform_5, window_bounds = array<i64: 128, 128>}, {transform_indices = @transform_6, window_bounds = array<i64: 1>}]} {
    %c0_i32 = arith.constant 0 : i32
    %0 = arith.cmpi eq, %arg0, %c0_i32 : i32
    %1 = arith.extui %0 : i1 to i32
    %c0_i32_0 = arith.constant 0 : i32
    %2 = arith.cmpi ne, %1, %c0_i32_0 : i32
    scf.if %2 {
      %c0_32 = arith.constant 0 : index
      %c0_33 = arith.constant 0 : index
      %65 = vector.load %arg1[%c0_32, %c0_33] : memref<128x128xf32, #tpu.memory_space<vmem>>, vector<128x128xf32>
      %66 = arith.mulf %65, %65 : vector<128x128xf32>
      %cst_34 = arith.constant dense<0.000000e+00> : vector<128xf32>
      %67 = vector.multi_reduction <add>, %66, %cst_34 [1] : vector<128x128xf32> to vector<128xf32>
      %68 = vector.shape_cast %67 : vector<128xf32> to vector<128x1xf32>
      %cst_35 = arith.constant 1.000000e-24 : f32
      %69 = vector.broadcast %cst_35 : f32 to vector<128x1xf32>
      %70 = arith.maximumf %68, %69 : vector<128x1xf32>
      %71 = math.rsqrt %70 : vector<128x1xf32>
      %72 = vector.broadcast %71 : vector<128x1xf32> to vector<128x128xf32>
      %73 = arith.mulf %65, %72 : vector<128x128xf32>
      %c0_36 = arith.constant 0 : index
      %c0_37 = arith.constant 0 : index
      %74 = vector.load %arg6[%c0_36, %c0_37] : memref<128x128xf32, #tpu.memory_space<vmem>>, vector<128x128xf32>
      tpu.vector_store %arg6[%c0_36, %c0_37], %73 {strides = array<i32>} : memref<128x128xf32, #tpu.memory_space<vmem>>, vector<128x128xf32>,
      %cst_38 = arith.constant 0.000000e+00 : f32
      %75 = vector.broadcast %cst_38 : f32 to vector<1x128xf32>
      %c0_39 = arith.constant 0 : index
      %c0_40 = arith.constant 0 : index
      %76 = vector.load %arg8[%c0_39, %c0_40] : memref<1x128xf32, #tpu.memory_space<vmem>>, vector<1x128xf32>
      tpu.vector_store %arg8[%c0_39, %c0_40], %75 {strides = array<i32>} : memref<1x128xf32, #tpu.memory_space<vmem>>, vector<1x128xf32>,
      %cst_41 = arith.constant 0.000000e+00 : f32
      %c0_42 = arith.constant 0 : index
      %77 = memref.load %arg9[%c0_42] : memref<1xf32, #tpu.memory_space<smem>>
      memref.store %cst_41, %arg9[%c0_42] : memref<1xf32, #tpu.memory_space<smem>>
      %cst_43 = arith.constant 0.000000e+00 : f32
      %c0_44 = arith.constant 0 : index
      %78 = memref.load %arg10[%c0_44] : memref<1xf32, #tpu.memory_space<smem>>
      memref.store %cst_43, %arg10[%c0_44] : memref<1xf32, #tpu.memory_space<smem>>
    } else {
    }
    %c0 = arith.constant 0 : index
    %c0_1 = arith.constant 0 : index
    %3 = vector.load %arg2[%c0, %c0_1] : memref<128x256xbf16, #tpu.memory_space<vmem>>, vector<128x256xbf16>
    %c0_2 = arith.constant 0 : index
    %c0_3 = arith.constant 0 : index
    %4 = vector.load %arg3[%c0_2, %c0_3] : memref<256x128xbf16, #tpu.memory_space<vmem>>, vector<256x128xbf16>
    %cst = arith.constant dense<0.000000e+00> : vector<128x128xf32>
    %5 = tpu.matmul %3, %4, %cst {dimension_numbers = #tpu.dot_dimension_numbers<[1], [0], [0], [1], [0, 0, 1, 1], [], []>} : vector<128x256xbf16>, vector<256x128xbf16>, vector<128x128xf32> -> vector<128x128xf32>
    %c0_4 = arith.constant 0 : index
    %c0_5 = arith.constant 0 : index
    %6 = vector.load %arg4[%c0_4, %c0_5] : memref<1x128xf32, #tpu.memory_space<vmem>>, vector<1x128xf32>
    %7 = vector.broadcast %6 : vector<1x128xf32> to vector<128x128xf32>
    %8 = arith.addf %5, %7 : vector<128x128xf32>
    %9 = arith.mulf %8, %8 : vector<128x128xf32>
    %cst_6 = arith.constant dense<0.000000e+00> : vector<128xf32>
    %10 = vector.multi_reduction <add>, %9, %cst_6 [1] : vector<128x128xf32> to vector<128xf32>
    %11 = vector.shape_cast %10 : vector<128xf32> to vector<128x1xf32>
    %cst_7 = arith.constant 1.000000e-24 : f32
    %12 = vector.broadcast %cst_7 : f32 to vector<128x1xf32>
    %13 = arith.maximumf %11, %12 : vector<128x1xf32>
    %14 = math.rsqrt %13 : vector<128x1xf32>
    %15 = vector.broadcast %14 : vector<128x1xf32> to vector<128x128xf32>
    %16 = arith.mulf %8, %15 : vector<128x128xf32>
    %c0_8 = arith.constant 0 : index
    %c0_9 = arith.constant 0 : index
    %17 = vector.load %arg5[%c0_8, %c0_9] : memref<128x128xf32, #tpu.memory_space<vmem>>, vector<128x128xf32>
    tpu.vector_store %arg5[%c0_8, %c0_9], %16 {strides = array<i32>} : memref<128x128xf32, #tpu.memory_space<vmem>>, vector<128x128xf32>,
    %c0_10 = arith.constant 0 : index
    %c0_11 = arith.constant 0 : index
    %18 = vector.load %arg6[%c0_10, %c0_11] : memref<128x128xf32, #tpu.memory_space<vmem>>, vector<128x128xf32>
    %cst_12 = arith.constant 14.2857141 : f32
    %19 = vector.broadcast %cst_12 : f32 to vector<128x128xf32>
    %20 = arith.mulf %16, %19 : vector<128x128xf32>
    %cst_13 = arith.constant dense<0.000000e+00> : vector<128x128xf32>
    %21 = tpu.matmul %20, %18, %cst_13 {dimension_numbers = #tpu.dot_dimension_numbers<[1], [1], [0], [0], [0, 0, 1, 0], [], []>} : vector<128x128xf32>, vector<128x128xf32>, vector<128x128xf32> -> vector<128x128xf32>
    %cst_14 = arith.constant dense<0xFF800000> : vector<128xf32>
    %22 = vector.multi_reduction <maximumf>, %21, %cst_14 [1] : vector<128x128xf32> to vector<128xf32>
    %23 = vector.shape_cast %22 : vector<128xf32> to vector<128x1xf32>
    %24 = vector.broadcast %23 : vector<128x1xf32> to vector<128x128xf32>
    %25 = arith.subf %21, %24 : vector<128x128xf32>
    %26 = math.exp %25 : vector<128x128xf32>
    %cst_15 = arith.constant dense<0.000000e+00> : vector<128xf32>
    %27 = vector.multi_reduction <add>, %26, %cst_15 [1] : vector<128x128xf32> to vector<128xf32>
    %28 = vector.shape_cast %27 : vector<128xf32> to vector<128x1xf32>
    %29 = math.log %28 : vector<128x1xf32>
    %30 = arith.addf %23, %29 : vector<128x1xf32>
    %c0_16 = arith.constant 0 : index
    %31 = memref.load %arg9[%c0_16] : memref<1xf32, #tpu.memory_space<smem>>
    %32 = vector.shape_cast %30 : vector<128x1xf32> to vector<1x128x1xf32>
    %cst_17 = arith.constant dense<0.000000e+00> : vector<1xf32>
    %33 = vector.multi_reduction <add>, %32, %cst_17 [1, 2] : vector<1x128x1xf32> to vector<1xf32>
    %34 = vector.shape_cast %33 : vector<1xf32> to vector<1x1x1xf32>
    %35 = vector.extract %34[0, 0, 0] : f32 from vector<1x1x1xf32>
    %36 = arith.addf %31, %35 : f32
    %c0_18 = arith.constant 0 : index
    %37 = memref.load %arg9[%c0_18] : memref<1xf32, #tpu.memory_space<smem>>
    memref.store %36, %arg9[%c0_18] : memref<1xf32, #tpu.memory_space<smem>>
    %c128_i32 = arith.constant 128 : i32
    %38 = arith.muli %arg0, %c128_i32 : i32
    %39 = tpu.assume_multiple %38, 128 : i32
    %40 = arith.index_cast %39 : i32 to index
    %c0_19 = arith.constant 0 : index
    %41 = vector.load %arg6[%40, %c0_19] : memref<128x128xf32, #tpu.memory_space<vmem>>, vector<128x128xf32>
    %42 = arith.mulf %20, %41 : vector<128x128xf32>
    %cst_20 = arith.constant dense<0.000000e+00> : vector<128xf32>
    %43 = vector.multi_reduction <add>, %42, %cst_20 [1] : vector<128x128xf32> to vector<128xf32>
    %44 = vector.shape_cast %43 : vector<128xf32> to vector<128x1xf32>
    %c0_21 = arith.constant 0 : index
    %45 = memref.load %arg10[%c0_21] : memref<1xf32, #tpu.memory_space<smem>>
    %46 = vector.shape_cast %44 : vector<128x1xf32> to vector<1x128x1xf32>
    %cst_22 = arith.constant dense<0.000000e+00> : vector<1xf32>
    %47 = vector.multi_reduction <add>, %46, %cst_22 [1, 2] : vector<1x128x1xf32> to vector<1xf32>
    %48 = vector.shape_cast %47 : vector<1xf32> to vector<1x1x1xf32>
    %49 = vector.extract %48[0, 0, 0] : f32 from vector<1x1x1xf32>
    %50 = arith.addf %45, %49 : f32
    %c0_23 = arith.constant 0 : index
    %51 = memref.load %arg10[%c0_23] : memref<1xf32, #tpu.memory_space<smem>>
    memref.store %50, %arg10[%c0_23] : memref<1xf32, #tpu.memory_space<smem>>
    %cst_24 = arith.constant 14.2857141 : f32
    %52 = vector.broadcast %cst_24 : f32 to vector<128x1xf32>
    %53 = arith.subf %23, %52 : vector<128x1xf32>
    %54 = math.exp %53 : vector<128x1xf32>
    %c0_25 = arith.constant 0 : index
    %c0_26 = arith.constant 0 : index
    %55 = vector.load %arg8[%c0_25, %c0_26] : memref<1x128xf32, #tpu.memory_space<vmem>>, vector<1x128xf32>
    %56 = vector.broadcast %54 : vector<128x1xf32> to vector<128x128xf32>
    %57 = arith.mulf %26, %56 : vector<128x128xf32>
    %cst_27 = arith.constant dense<0.000000e+00> : vector<128xf32>
    %58 = vector.multi_reduction <add>, %57, %cst_27 [0] : vector<128x128xf32> to vector<128xf32>
    %59 = vector.shape_cast %58 : vector<128xf32> to vector<1x128xf32>
    %60 = arith.addf %55, %59 : vector<1x128xf32>
    %c0_28 = arith.constant 0 : index
    %c0_29 = arith.constant 0 : index
    %61 = vector.load %arg8[%c0_28, %c0_29] : memref<1x128xf32, #tpu.memory_space<vmem>>, vector<1x128xf32>
    tpu.vector_store %arg8[%c0_28, %c0_29], %60 {strides = array<i32>} : memref<1x128xf32, #tpu.memory_space<vmem>>, vector<1x128xf32>,
    %c0_i32_30 = arith.constant 0 : i32
    %62 = arith.cmpi eq, %arg0, %c0_i32_30 : i32
    %63 = arith.extui %62 : i1 to i32
    %c0_i32_31 = arith.constant 0 : i32
    %64 = arith.cmpi ne, %63, %c0_i32_31 : i32
    scf.if %64 {
      %c0_32 = arith.constant 0 : index
      %c0_33 = arith.constant 0 : index
      %65 = vector.load %arg8[%c0_32, %c0_33] : memref<1x128xf32, #tpu.memory_space<vmem>>, vector<1x128xf32>
      %66 = math.log %65 : vector<1x128xf32>
      %cst_34 = arith.constant 14.2857141 : f32
      %67 = vector.broadcast %cst_34 : f32 to vector<1x128xf32>
      %68 = arith.addf %67, %66 : vector<1x128xf32>
      %c0_35 = arith.constant 0 : index
      %69 = memref.load %arg9[%c0_35] : memref<1xf32, #tpu.memory_space<smem>>
      %cst_36 = arith.constant 7.812500e-03 : f32
      %70 = arith.mulf %69, %cst_36 : f32
      %71 = vector.shape_cast %68 : vector<1x128xf32> to vector<1x1x128xf32>
      %cst_37 = arith.constant dense<0.000000e+00> : vector<1xf32>
      %72 = vector.multi_reduction <add>, %71, %cst_37 [1, 2] : vector<1x1x128xf32> to vector<1xf32>
      %73 = vector.shape_cast %72 : vector<1xf32> to vector<1x1x1xf32>
      %74 = vector.extract %73[0, 0, 0] : f32 from vector<1x1x1xf32>
      %cst_38 = arith.constant 7.812500e-03 : f32
      %75 = arith.mulf %74, %cst_38 : f32
      %c0_39 = arith.constant 0 : index
      %76 = memref.load %arg10[%c0_39] : memref<1xf32, #tpu.memory_space<smem>>
      %cst_40 = arith.constant 7.812500e-03 : f32
      %77 = arith.mulf %76, %cst_40 : f32
      %78 = arith.addf %70, %75 : f32
      %cst_41 = arith.constant 5.000000e-01 : f32
      %79 = arith.mulf %cst_41, %78 : f32
      %80 = arith.subf %79, %77 : f32
      %c0_42 = arith.constant 0 : index
      %81 = memref.load %arg7[%c0_42] : memref<1xf32, #tpu.memory_space<smem>>
      memref.store %80, %arg7[%c0_42] : memref<1xf32, #tpu.memory_space<smem>>
    } else {
    }
    return
  }
  func.func @transform_0(%arg0: i32) -> (i32, i32) {
    %c0_i32 = arith.constant 0 : i32
    %c0_i32_0 = arith.constant 0 : i32
    %c0_i32_1 = arith.constant 0 : i32
    return %c0_i32, %c0_i32_0 : i32, i32
  }
  func.func @transform_1(%arg0: i32) -> (i32, i32) {
    %c0_i32 = arith.constant 0 : i32
    %c0_i32_0 = arith.constant 0 : i32
    return %arg0, %c0_i32 : i32, i32
  }
  func.func @transform_2(%arg0: i32) -> (i32, i32) {
    %c0_i32 = arith.constant 0 : i32
    %c0_i32_0 = arith.constant 0 : i32
    %c0_i32_1 = arith.constant 0 : i32
    return %c0_i32, %c0_i32_0 : i32, i32
  }
  func.func @transform_3(%arg0: i32) -> (i32, i32) {
    %c0_i32 = arith.constant 0 : i32
    %c0_i32_0 = arith.constant 0 : i32
    %c0_i32_1 = arith.constant 0 : i32
    return %c0_i32, %c0_i32_0 : i32, i32
  }
  func.func @transform_4(%arg0: i32) -> (i32, i32) {
    %c0_i32 = arith.constant 0 : i32
    %c0_i32_0 = arith.constant 0 : i32
    return %arg0, %c0_i32 : i32, i32
  }
  func.func @transform_5(%arg0: i32) -> (i32, i32) {
    %c0_i32 = arith.constant 0 : i32
    %c0_i32_0 = arith.constant 0 : i32
    %c0_i32_1 = arith.constant 0 : i32
    return %c0_i32, %c0_i32_0 : i32, i32
  }
  func.func @transform_6(%arg0: i32) -> i32 {
    %c0_i32 = arith.constant 0 : i32
    %c0_i32_0 = arith.constant 0 : i32
    return %c0_i32 : i32
  }
}

</mosaic_0001>

<llo_original>
// kernel: tpu_custom_call.1
$region0: #{tpu_custom_call.1}
  #allocation0 [shape = 'u32[]', space=smem, size = 0x4, offset = 0x4, fixed_abs, tag = 'smem constant byte address 0x4 - core index']
  #allocation1 [shape = 'u32[144,128]{1,0:T(1,128)}', space=vmem, size = 0x12000, scoped, tag = 'internal scratch']
  #allocation2 [shape = 'f32[1,128]{1,0:T(1,128)}', space=vmem, size = 0x200, scoped, tag = 'scratch operand']
  #allocation3 [shape = 'f32[1]{0:T(128)}', space=smem, size = 0x200, scoped, tag = 'scratch operand']
  #allocation4 [shape = 'f32[1]{0:T(128)}', space=smem, size = 0x200, scoped, tag = 'scratch operand']
  %s0 = inlined_call_operand.hbm [shape: f32[128,128], index: 0, kind: input, shape index: {}]
  %s1 = inlined_call_operand.hbm [shape: bf16[128,256], index: 1, kind: input, shape index: {}]
  %s2 = inlined_call_operand.hbm [shape: bf16[256,128], index: 2, kind: input, shape index: {}]
  %s3 = inlined_call_operand.vmem [shape: f32[1,128], index: 3, kind: input, shape index: {}]
  %s4 = inlined_call_operand.hbm [shape: f32[128,128], index: 4, kind: output, shape index: {0}]
  %s5 = inlined_call_operand.hbm [shape: f32[128,128], index: 5, kind: output, shape index: {1}]
  %s6 = inlined_call_operand.hbm [shape: f32[1], index: 6, kind: output, shape index: {2}]
  %7 = xla_tuple %s4, %s5, %s6
  %s8 = sld [smem:[#allocation0]]
  $region62: #{tpu_custom_call.1} parent=0
    _
  %s10 = ssub.s32 1, %s8
  %s11 = scalar_select 0, %s10, %s8
  $region1: #{tpu_custom_call.1} parent=0
    #allocation5 [shape = 'u8[65536]{0}', space=vmem, size = 0x10000, scoped, tag = 'input window, operand 0, single buffered']
    #allocation6 [shape = 's32[1]{0}', space=sflag, size = 0x4, scoped, tag = 'scoped memory for tpu_custom_call.1']
    #allocation7 [shape = 's32[1]{0}', space=sflag, size = 0x4, scoped, tag = 'scoped memory for tpu_custom_call.1']
    #allocation8 [shape = 's32[1]{0}', space=sflag, size = 0x4, scoped, tag = 'scoped memory for tpu_custom_call.1']
    #allocation9 [shape = 'u8[65536]{0}', space=vmem, size = 0x10000, scoped, tag = 'input window, operand 1, single buffered']
    #allocation10 [shape = 's32[1]{0}', space=sflag, size = 0x4, scoped, tag = 'scoped memory for tpu_custom_call.1']
    #allocation11 [shape = 'u8[65536]{0}', space=vmem, size = 0x10000, scoped, tag = 'input window, operand 2, single buffered']
    #allocation12 [shape = 'u8[65536]{0}', space=vmem, size = 0x10000, scoped, tag = 'output window, operand 0, single buffered']
    #allocation13 [shape = 'u8[65536]{0}', space=vmem, size = 0x10000, scoped, tag = 'output window, operand 1, single buffered']
    #allocation14 [shape = 's32[1]{0}', space=sflag, size = 0x4, scoped, tag = 'scoped memory for tpu_custom_call.1']
    #allocation15 [shape = 'u8[512]{0}', space=smem, size = 0x200, scoped, tag = 'output window, operand 2, single buffered']
    %12 = vsyncpa [#allocation6], 0
    %13 = vsyncpa [#allocation10], 0
    %14 = vsyncpa [#allocation7], 0
    %15 = vsyncpa [#allocation14], 0
    %16 = vsyncpa [#allocation8], 0
    // Predicated region
    $region2: #{tpu_custom_call.1} parent=1 // pred_check
      _
    $region3: #{tpu_custom_call.1} parent=1 // pred_check_branch
      %18 = sbr.rel (0) target = $region5
    $region4: #{tpu_custom_call.1} parent=1 // pred_region
      %s20 = ssub.s32 2048, 2048
      %21 = vsyncadd [#allocation6], %s20
      %s22 = sshll.u32 [#allocation5], 4
      %s23 = int_to_ptr.vmem [resolvable:$true] %s22
      %28 = dma.hbm_to_vmem [thread:$0]  %s0, 2048, %s23, [#allocation6], 128, 128, 8
    $region5: #{tpu_custom_call.1} parent=1 // pred_fallthru
      _
    // Predicated region
    $region6: #{tpu_custom_call.1} parent=1 // pred_check
      _
    $region7: #{tpu_custom_call.1} parent=1 // pred_check_branch
      %30 = sbr.rel (0) target = $region9
    $region8: #{tpu_custom_call.1} parent=1 // pred_region
      %s32 = ssub.s32 2048, 2048
      %33 = vsyncadd [#allocation10], %s32
      %s34 = sshll.u32 [#allocation9], 4
      %s35 = int_to_ptr.vmem [resolvable:$true] %s34
      %40 = dma.hbm_to_vmem [thread:$0]  %s1, 2048, %s35, [#allocation10], 128, 128, 8
    $region9: #{tpu_custom_call.1} parent=1 // pred_fallthru
      _
    // Predicated region
    $region10: #{tpu_custom_call.1} parent=1 // pred_check
      _
    $region11: #{tpu_custom_call.1} parent=1 // pred_check_branch
      %42 = sbr.rel (0) target = $region13
    $region12: #{tpu_custom_call.1} parent=1 // pred_region
      %s44 = ssub.s32 2048, 2048
      %45 = vsyncadd [#allocation10], %s44
      %s46 = sshll.u32 [#allocation11], 4
      %s47 = int_to_ptr.vmem [resolvable:$true] %s46
      %52 = dma.hbm_to_vmem [thread:$0]  %s2, 2048, %s47, [#allocation10], 64, 64, 4
    $region13: #{tpu_custom_call.1} parent=1 // pred_fallthru
      _
    // Predicated region
    $region14: #{tpu_custom_call.1} parent=1 // pred_check
      _
    $region15: #{tpu_custom_call.1} parent=1 // pred_check_branch
      %54 = sbr.rel (0) target = $region17
    $region16: #{tpu_custom_call.1} parent=1 // pred_region
      _
    $region17: #{tpu_custom_call.1} parent=1 // pred_fallthru
      _
    // Predicated region
    $region18: #{tpu_custom_call.1} parent=1 // pred_check
      _
    $region19: #{tpu_custom_call.1} parent=1 // pred_check_branch
      %56 = sbr.rel (0) target = $region21
    $region20: #{tpu_custom_call.1} parent=1 // pred_region
      %57 = dma.done [#allocation6], 2048
    $region21: #{tpu_custom_call.1} parent=1 // pred_fallthru
      _
    // Predicated region
    $region22: #{tpu_custom_call.1} parent=1 // pred_check
      _
    $region23: #{tpu_custom_call.1} parent=1 // pred_check_branch
      %59 = sbr.rel (0) target = $region25
    $region24: #{tpu_custom_call.1} parent=1 // pred_region
      %60 = dma.done [#allocation10], 2048
    $region25: #{tpu_custom_call.1} parent=1 // pred_fallthru
      _
    // Predicated region
    $region26: #{tpu_custom_call.1} parent=1 // pred_check
      _
    $region27: #{tpu_custom_call.1} parent=1 // pred_check_branch
      %62 = sbr.rel (0) target = $region29
    $region28: #{tpu_custom_call.1} parent=1 // pred_region
      %63 = dma.done [#allocation10], 2048
    $region29: #{tpu_custom_call.1} parent=1 // pred_fallthru
      _
    %p65 = scmp.eq.s32.totalorder 0, 0
    // Predicated region
    $region30: #{tpu_custom_call.1} parent=1 // pred_check
      %p66 = pneg %p65
    $region31: #{tpu_custom_call.1} parent=1 // pred_check_branch
      %68 = sbr.rel (%p66) target = $region33
    $region32: #{tpu_custom_call.1} parent=1 // pred_region
      %v69 = vld [vmem:[#allocation5] sm:$0xff]
      %v70 = vld [vmem:[#allocation5 + $0x8] sm:$0xff]
      %v71 = vld [vmem:[#allocation5 + $0x10] sm:$0xff]
      %v72 = vld [vmem:[#allocation5 + $0x18] sm:$0xff]
      %v73 = vld [vmem:[#allocation5 + $0x20] sm:$0xff]
      %v74 = vld [vmem:[#allocation5 + $0x28] sm:$0xff]
      %v75 = vld [vmem:[#allocation5 + $0x30] sm:$0xff]
      %v76 = vld [vmem:[#allocation5 + $0x38] sm:$0xff]
      %v77 = vld [vmem:[#allocation5 + $0x40] sm:$0xff]
      %v78 = vld [vmem:[#allocation5 + $0x48] sm:$0xff]
      %v79 = vld [vmem:[#allocation5 + $0x50] sm:$0xff]
      %v80 = vld [vmem:[#allocation5 + $0x58] sm:$0xff]
      %v81 = vld [vmem:[#allocation5 + $0x60] sm:$0xff]
      %v82 = vld [vmem:[#allocation5 + $0x68] sm:$0xff]
      %v83 = vld [vmem:[#allocation5 + $0x70] sm:$0xff]
      %v84 = vld [vmem:[#allocation5 + $0x78] sm:$0xff]
      %v85 = vmul.f32 %v69, %v69
      %v86 = vmul.f32 %v70, %v70
      %v87 = vmul.f32 %v71, %v71
      %v88 = vmul.f32 %v72, %v72
      %v89 = vmul.f32 %v73, %v73
      %v90 = vmul.f32 %v74, %v74
      %v91 = vmul.f32 %v75, %v75
      %v92 = vmul.f32 %v76, %v76
      %v93 = vmul.f32 %v77, %v77
      %v94 = vmul.f32 %v78, %v78
      %v95 = vmul.f32 %v79, %v79
      %v96 = vmul.f32 %v80, %v80
      %v97 = vmul.f32 %v81, %v81
      %v98 = vmul.f32 %v82, %v82
      %v99 = vmul.f32 %v83, %v83
      %v100 = vmul.f32 %v84, %v84
      %101 = vadd.xlane.f32.xlu0 %v85
      %v102 = vpop.xlane.xlu0 %101
      %103 = vadd.xlane.f32.xlu0 %v86
      %v104 = vpop.xlane.xlu0 %103
      %105 = vadd.xlane.f32.xlu0 %v87
      %v106 = vpop.xlane.xlu0 %105
      %107 = vadd.xlane.f32.xlu0 %v88
      %v108 = vpop.xlane.xlu0 %107
      %109 = vadd.xlane.f32.xlu0 %v89
      %v110 = vpop.xlane.xlu0 %109
      %111 = vadd.xlane.f32.xlu0 %v90
      %v112 = vpop.xlane.xlu0 %111
      %113 = vadd.xlane.f32.xlu0 %v91
      %v114 = vpop.xlane.xlu0 %113
      %115 = vadd.xlane.f32.xlu0 %v92
      %v116 = vpop.xlane.xlu0 %115
      %117 = vadd.xlane.f32.xlu0 %v93
      %v118 = vpop.xlane.xlu0 %117
      %119 = vadd.xlane.f32.xlu0 %v94
      %v120 = vpop.xlane.xlu0 %119
      %121 = vadd.xlane.f32.xlu0 %v95
      %v122 = vpop.xlane.xlu0 %121
      %123 = vadd.xlane.f32.xlu0 %v96
      %v124 = vpop.xlane.xlu0 %123
      %125 = vadd.xlane.f32.xlu0 %v97
      %v126 = vpop.xlane.xlu0 %125
      %127 = vadd.xlane.f32.xlu0 %v98
      %v128 = vpop.xlane.xlu0 %127
      %129 = vadd.xlane.f32.xlu0 %v99
      %v130 = vpop.xlane.xlu0 %129
      %131 = vadd.xlane.f32.xlu0 %v100
      %v132 = vpop.xlane.xlu0 %131
      %v133 = vmax.f32 %v102, 1e-24
      %v134 = vmax.f32 %v104, 1e-24
      %v135 = vmax.f32 %v106, 1e-24
      %v136 = vmax.f32 %v108, 1e-24
      %v137 = vmax.f32 %v110, 1e-24
      %v138 = vmax.f32 %v112, 1e-24
      %v139 = vmax.f32 %v114, 1e-24
      %v140 = vmax.f32 %v116, 1e-24
      %v141 = vmax.f32 %v118, 1e-24
      %v142 = vmax.f32 %v120, 1e-24
      %v143 = vmax.f32 %v122, 1e-24
      %v144 = vmax.f32 %v124, 1e-24
      %v145 = vmax.f32 %v126, 1e-24
      %v146 = vmax.f32 %v128, 1e-24
      %v147 = vmax.f32 %v130, 1e-24
      %v148 = vmax.f32 %v132, 1e-24
      %v149 = vrsqrt.pop %v133
      %v150 = vrsqrt.pop %v134
      %v151 = vrsqrt.pop %v135
      %v152 = vrsqrt.pop %v136
      %v153 = vrsqrt.pop %v137
      %v154 = vrsqrt.pop %v138
      %v155 = vrsqrt.pop %v139
      %v156 = vrsqrt.pop %v140
      %v157 = vrsqrt.pop %v141
      %v158 = vrsqrt.pop %v142
      %v159 = vrsqrt.pop %v143
      %v160 = vrsqrt.pop %v144
      %v161 = vrsqrt.pop %v145
      %v162 = vrsqrt.pop %v146
      %v163 = vrsqrt.pop %v147
      %v164 = vrsqrt.pop %v148
      %v165 = vmul.f32 %v69, %v149
      %v166 = vmul.f32 %v70, %v150
      %v167 = vmul.f32 %v71, %v151
      %v168 = vmul.f32 %v72, %v152
      %v169 = vmul.f32 %v73, %v153
      %v170 = vmul.f32 %v74, %v154
      %v171 = vmul.f32 %v75, %v155
      %v172 = vmul.f32 %v76, %v156
      %v173 = vmul.f32 %v77, %v157
      %v174 = vmul.f32 %v78, %v158
      %v175 = vmul.f32 %v79, %v159
      %v176 = vmul.f32 %v80, %v160
      %v177 = vmul.f32 %v81, %v161
      %v178 = vmul.f32 %v82, %v162
      %v179 = vmul.f32 %v83, %v163
      %v180 = vmul.f32 %v84, %v164
      %181 = vst [vmem:[#allocation13] sm:$0xff] %v165
      %182 = vst [vmem:[#allocation13 + $0x8] sm:$0xff] %v166
      %183 = vst [vmem:[#allocation13 + $0x10] sm:$0xff] %v167
      %184 = vst [vmem:[#allocation13 + $0x18] sm:$0xff] %v168
      %185 = vst [vmem:[#allocation13 + $0x20] sm:$0xff] %v169
      %186 = vst [vmem:[#allocation13 + $0x28] sm:$0xff] %v170
      %187 = vst [vmem:[#allocation13 + $0x30] sm:$0xff] %v171
      %188 = vst [vmem:[#allocation13 + $0x38] sm:$0xff] %v172
      %189 = vst [vmem:[#allocation13 + $0x40] sm:$0xff] %v173
      %190 = vst [vmem:[#allocation13 + $0x48] sm:$0xff] %v174
      %191 = vst [vmem:[#allocation13 + $0x50] sm:$0xff] %v175
      %192 = vst [vmem:[#allocation13 + $0x58] sm:$0xff] %v176
      %193 = vst [vmem:[#allocation13 + $0x60] sm:$0xff] %v177
      %194 = vst [vmem:[#allocation13 + $0x68] sm:$0xff] %v178
      %195 = vst [vmem:[#allocation13 + $0x70] sm:$0xff] %v179
      %196 = vst [vmem:[#allocation13 + $0x78] sm:$0xff] %v180
      %197 = vst [vmem:[#allocation2] sm:$0x1] 0.0
      %s198 = scalar_lea.smem [#allocation3], 0
      %199 = sst [smem:[%s198]] 0.0
      %s200 = scalar_lea.smem [#allocation4], 0
      %201 = sst [smem:[%s200]] 0.0
    $region33: #{tpu_custom_call.1} parent=1 // pred_fallthru
      _
    %v202 = vld [vmem:[#allocation9] sm:$0xff]
    %v203 = vld [vmem:[#allocation9 + $0x8] sm:$0xff]
    %v204 = vld [vmem:[#allocation9 + $0x10] sm:$0xff]
    %v205 = vld [vmem:[#allocation9 + $0x18] sm:$0xff]
    %v206 = vld [vmem:[#allocation9 + $0x20] sm:$0xff]
    %v207 = vld [vmem:[#allocation9 + $0x28] sm:$0xff]
    %v208 = vld [vmem:[#allocation9 + $0x30] sm:$0xff]
    %v209 = vld [vmem:[#allocation9 + $0x38] sm:$0xff]
    %v210 = vld [vmem:[#allocation9 + $0x40] sm:$0xff]
    %v211 = vld [vmem:[#allocation9 + $0x48] sm:$0xff]
    %v212 = vld [vmem:[#allocation9 + $0x50] sm:$0xff]
    %v213 = vld [vmem:[#allocation9 + $0x58] sm:$0xff]
    %v214 = vld [vmem:[#allocation9 + $0x60] sm:$0xff]
    %v215 = vld [vmem:[#allocation9 + $0x68] sm:$0xff]
    %v216 = vld [vmem:[#allocation9 + $0x70] sm:$0xff]
    %v217 = vld [vmem:[#allocation9 + $0x78] sm:$0xff]
    %v218 = vld [vmem:[#allocation11] sm:$0xf]
    %v219 = vld [vmem:[#allocation11 + $0x4] sm:$0xf]
    %v220 = vld [vmem:[#allocation11 + $0x8] sm:$0xf]
    %v221 = vld [vmem:[#allocation11 + $0xc] sm:$0xf]
    %v222 = vld [vmem:[#allocation11 + $0x10] sm:$0xf]
    %v223 = vld [vmem:[#allocation11 + $0x14] sm:$0xf]
    %v224 = vld [vmem:[#allocation11 + $0x18] sm:$0xf]
    %v225 = vld [vmem:[#allocation11 + $0x1c] sm:$0xf]
    %v226 = vld [vmem:[#allocation11 + $0x20] sm:$0xf]
    %v227 = vld [vmem:[#allocation11 + $0x24] sm:$0xf]
    %v228 = vld [vmem:[#allocation11 + $0x28] sm:$0xf]
    %v229 = vld [vmem:[#allocation11 + $0x2c] sm:$0xf]
    %v230 = vld [vmem:[#allocation11 + $0x30] sm:$0xf]
    %v231 = vld [vmem:[#allocation11 + $0x34] sm:$0xf]
    %v232 = vld [vmem:[#allocation11 + $0x38] sm:$0xf]
    %v233 = vld [vmem:[#allocation11 + $0x3c] sm:$0xf]
    %v234 = vld [vmem:[#allocation11 + $0x40] sm:$0xf]
    %v235 = vld [vmem:[#allocation11 + $0x44] sm:$0xf]
    %v236 = vld [vmem:[#allocation11 + $0x48] sm:$0xf]
    %v237 = vld [vmem:[#allocation11 + $0x4c] sm:$0xf]
    %v238 = vld [vmem:[#allocation11 + $0x50] sm:$0xf]
    %v239 = vld [vmem:[#allocation11 + $0x54] sm:$0xf]
    %v240 = vld [vmem:[#allocation11 + $0x58] sm:$0xf]
    %v241 = vld [vmem:[#allocation11 + $0x5c] sm:$0xf]
    %v242 = vld [vmem:[#allocation11 + $0x60] sm:$0xf]
    %v243 = vld [vmem:[#allocation11 + $0x64] sm:$0xf]
    %v244 = vld [vmem:[#allocation11 + $0x68] sm:$0xf]
    %v245 = vld [vmem:[#allocation11 + $0x6c] sm:$0xf]
    %v246 = vld [vmem:[#allocation11 + $0x70] sm:$0xf]
    %v247 = vld [vmem:[#allocation11 + $0x74] sm:$0xf]
    %v248 = vld [vmem:[#allocation11 + $0x78] sm:$0xf]
    %v249 = vld [vmem:[#allocation11 + $0x7c] sm:$0xf]
    %v250 = vld [vmem:[%s3] sm:$0x1]
    %v252 = vlaneseq
    %v253 = vshrl.u32 %v252, 7
    %v254 = vsub.s32 0, %v253
    %v255 = vrot.slane %v250, %v254
    %v273 = vunpack.c.l.b16 %v202
    %v274 = vunpack.c.h.b16 %v202
    %v275 = vunpack.c.l.b16 %v203
    %v276 = vunpack.c.h.b16 %v203
    %v277 = vunpack.c.l.b16 %v204
    %v278 = vunpack.c.h.b16 %v204
    %v279 = vunpack.c.l.b16 %v205
    %v280 = vunpack.c.h.b16 %v205
    %v281 = vunpack.c.l.b16 %v206
    %v282 = vunpack.c.h.b16 %v206
    %v283 = vunpack.c.l.b16 %v207
    %v284 = vunpack.c.h.b16 %v207
    %v285 = vunpack.c.l.b16 %v208
    %v286 = vunpack.c.h.b16 %v208
    %v287 = vunpack.c.l.b16 %v209
    %v288 = vunpack.c.h.b16 %v209
    %v289 = vunpack.c.l.b16 %v210
    %v290 = vunpack.c.h.b16 %v210
    %v291 = vunpack.c.l.b16 %v211
    %v292 = vunpack.c.h.b16 %v211
    %v293 = vunpack.c.l.b16 %v212
    %v294 = vunpack.c.h.b16 %v212
    %v295 = vunpack.c.l.b16 %v213
    %v296 = vunpack.c.h.b16 %v213
    %v297 = vunpack.c.l.b16 %v214
    %v298 = vunpack.c.h.b16 %v214
    %v299 = vunpack.c.l.b16 %v215
    %v300 = vunpack.c.h.b16 %v215
    %v301 = vunpack.c.l.b16 %v216
    %v302 = vunpack.c.h.b16 %v216
    %v303 = vunpack.c.l.b16 %v217
    %v304 = vunpack.c.h.b16 %v217
    %v305 = vpack.c.b16 %v275, %v273
    %v306 = vpack.c.b16 %v276, %v274
    %v307 = vpack.c.b16 %v279, %v277
    %v308 = vpack.c.b16 %v280, %v278
    %v309 = vpack.c.b16 %v283, %v281
    %v310 = vpack.c.b16 %v284, %v282
    %v311 = vpack.c.b16 %v287, %v285
    %v312 = vpack.c.b16 %v288, %v286
    %v313 = vpack.c.b16 %v291, %v289
    %v314 = vpack.c.b16 %v292, %v290
    %v315 = vpack.c.b16 %v295, %v293
    %v316 = vpack.c.b16 %v296, %v294
    %v317 = vpack.c.b16 %v299, %v297
    %v318 = vpack.c.b16 %v300, %v298
    %v319 = vpack.c.b16 %v303, %v301
    %v320 = vpack.c.b16 %v304, %v302
    %v369 = vunpack.c.l.b16 %v218
    %v370 = vunpack.c.l.b16 %v219
    %v371 = vunpack.c.l.b16 %v220
    %v372 = vunpack.c.l.b16 %v221
    %v373 = vunpack.c.l.b16 %v222
    %v374 = vunpack.c.l.b16 %v223
    %v375 = vunpack.c.l.b16 %v224
    %v376 = vunpack.c.l.b16 %v225
    %v377 = vunpack.c.l.b16 %v226
    %v378 = vunpack.c.l.b16 %v227
    %v379 = vunpack.c.l.b16 %v228
    %v380 = vunpack.c.l.b16 %v229
    %v381 = vunpack.c.l.b16 %v230
    %v382 = vunpack.c.l.b16 %v231
    %v383 = vunpack.c.l.b16 %v232
    %v384 = vunpack.c.l.b16 %v233
    %v385 = vunpack.c.l.b16 %v234
    %v386 = vunpack.c.l.b16 %v235
    %v387 = vunpack.c.l.b16 %v236
    %v388 = vunpack.c.l.b16 %v237
    %v389 = vunpack.c.l.b16 %v238
    %v390 = vunpack.c.l.b16 %v239
    %v391 = vunpack.c.l.b16 %v240
    %v392 = vunpack.c.l.b16 %v241
    %v393 = vunpack.c.l.b16 %v242
    %v394 = vunpack.c.l.b16 %v243
    %v395 = vunpack.c.l.b16 %v244
    %v396 = vunpack.c.l.b16 %v245
    %v397 = vunpack.c.l.b16 %v246
    %v398 = vunpack.c.l.b16 %v247
    %v399 = vunpack.c.l.b16 %v248
    %v400 = vunpack.c.l.b16 %v249
    %v401 = vpack.c.b16 %v370, %v369
    %v402 = vpack.c.b16 %v372, %v371
    %v403 = vpack.c.b16 %v374, %v373
    %v404 = vpack.c.b16 %v376, %v375
    %v405 = vpack.c.b16 %v378, %v377
    %v406 = vpack.c.b16 %v380, %v379
    %v407 = vpack.c.b16 %v382, %v381
    %v408 = vpack.c.b16 %v384, %v383
    %v409 = vpack.c.b16 %v386, %v385
    %v410 = vpack.c.b16 %v388, %v387
    %v411 = vpack.c.b16 %v390, %v389
    %v412 = vpack.c.b16 %v392, %v391
    %v413 = vpack.c.b16 %v394, %v393
    %v414 = vpack.c.b16 %v396, %v395
    %v415 = vpack.c.b16 %v398, %v397
    %v416 = vpack.c.b16 %v400, %v399
    %433 = vmatprep.subr.bf16.mxu0 0
    %434 = vmatpush1.bf16.msra.mxu0 %v401
    %435 = vmatprep.subr.bf16.mxu0 0
    %436 = vmatpush1.bf16.msra.mxu0 %v402
    %437 = vmatprep.subr.bf16.mxu0 0
    %438 = vmatpush1.bf16.msra.mxu0 %v403
    %439 = vmatprep.subr.bf16.mxu0 0
    %440 = vmatpush1.bf16.msra.mxu0 %v404
    %441 = vmatprep.subr.bf16.mxu0 0
    %442 = vmatpush1.bf16.msra.mxu0 %v405
    %443 = vmatprep.subr.bf16.mxu0 0
    %444 = vmatpush1.bf16.msra.mxu0 %v406
    %445 = vmatprep.subr.bf16.mxu0 0
    %446 = vmatpush1.bf16.msra.mxu0 %v407
    %447 = vmatprep.subr.bf16.mxu0 0
    %448 = vmatpush1.bf16.msra.mxu0 %v408
    %449 = vmatprep.subr.bf16.mxu0 0
    %450 = vmatpush1.bf16.msra.mxu0 %v409
    %451 = vmatprep.subr.bf16.mxu0 0
    %452 = vmatpush1.bf16.msra.mxu0 %v410
    %453 = vmatprep.subr.bf16.mxu0 0
    %454 = vmatpush1.bf16.msra.mxu0 %v411
    %455 = vmatprep.subr.bf16.mxu0 0
    %456 = vmatpush1.bf16.msra.mxu0 %v412
    %457 = vmatprep.subr.bf16.mxu0 0
    %458 = vmatpush1.bf16.msra.mxu0 %v413
    %459 = vmatprep.subr.bf16.mxu0 0
    %460 = vmatpush1.bf16.msra.mxu0 %v414
    %461 = vmatprep.subr.bf16.mxu0 0
    %462 = vmatpush1.bf16.msra.mxu0 %v415
    %463 = vmatprep.subr.bf16.mxu0 0
    %464 = vmatpush1.bf16.msra.mxu0 %v416
    %465 = vmatprep.mubr.bf16.mxu0 %v306
    %466 = vmatmul.mubr.bf16.gmra.mrb[0].mxu0 %v305
    %v467 = vpop.f32.mrb[0].mxu0
    %v468 = vadd.f32 %v255, %v467
    %v469 = vpop.f32.mrb[0].mxu0
    %v470 = vpop.f32.mrb[0].mxu0
    %v471 = vadd.f32 %v255, %v470
    %v472 = vpop.f32.mrb[0].mxu0
    %473 = vmatprep.mubr.bf16.mxu0 %v308
    %474 = vmatmul.mubr.bf16.gmra.mrb[0].mxu0 %v307
    %v475 = vpop.f32.mrb[0].mxu0
    %v476 = vadd.f32 %v255, %v475
    %v477 = vpop.f32.mrb[0].mxu0
    %v478 = vpop.f32.mrb[0].mxu0
    %v479 = vadd.f32 %v255, %v478
    %v480 = vpop.f32.mrb[0].mxu0
    %481 = vmatprep.mubr.bf16.mxu0 %v310
    %482 = vmatmul.mubr.bf16.gmra.mrb[0].mxu0 %v309
    %v483 = vpop.f32.mrb[0].mxu0
    %v484 = vadd.f32 %v255, %v483
    %v485 = vpop.f32.mrb[0].mxu0
    %v486 = vpop.f32.mrb[0].mxu0
    %v487 = vadd.f32 %v255, %v486
    %v488 = vpop.f32.mrb[0].mxu0
    %489 = vmatprep.mubr.bf16.mxu0 %v312
    %490 = vmatmul.mubr.bf16.gmra.mrb[0].mxu0 %v311
    %v491 = vpop.f32.mrb[0].mxu0
    %v492 = vadd.f32 %v255, %v491
    %v493 = vpop.f32.mrb[0].mxu0
    %v494 = vpop.f32.mrb[0].mxu0
    %v495 = vadd.f32 %v255, %v494
    %v496 = vpop.f32.mrb[0].mxu0
    %497 = vmatprep.mubr.bf16.mxu0 %v314
    %498 = vmatmul.mubr.bf16.gmra.mrb[0].mxu0 %v313
    %v499 = vpop.f32.mrb[0].mxu0
    %v500 = vadd.f32 %v255, %v499
    %v501 = vpop.f32.mrb[0].mxu0
    %v502 = vpop.f32.mrb[0].mxu0
    %v503 = vadd.f32 %v255, %v502
    %v504 = vpop.f32.mrb[0].mxu0
    %505 = vmatprep.mubr.bf16.mxu0 %v316
    %506 = vmatmul.mubr.bf16.gmra.mrb[0].mxu0 %v315
    %v507 = vpop.f32.mrb[0].mxu0
    %v508 = vadd.f32 %v255, %v507
    %v509 = vpop.f32.mrb[0].mxu0
    %v510 = vpop.f32.mrb[0].mxu0
    %v511 = vadd.f32 %v255, %v510
    %v512 = vpop.f32.mrb[0].mxu0
    %513 = vmatprep.mubr.bf16.mxu0 %v318
    %514 = vmatmul.mubr.bf16.gmra.mrb[0].mxu0 %v317
    %v515 = vpop.f32.mrb[0].mxu0
    %v516 = vadd.f32 %v255, %v515
    %v517 = vpop.f32.mrb[0].mxu0
    %v518 = vpop.f32.mrb[0].mxu0
    %v519 = vadd.f32 %v255, %v518
    %v520 = vpop.f32.mrb[0].mxu0
    %521 = vmatprep.mubr.bf16.mxu0 %v320
    %522 = vmatmul.mubr.bf16.gmra.mrb[0].mxu0 %v319
    %v523 = vpop.f32.mrb[0].mxu0
    %v524 = vadd.f32 %v255, %v523
    %v525 = vpop.f32.mrb[0].mxu0
    %v526 = vpop.f32.mrb[0].mxu0
    %v527 = vadd.f32 %v255, %v526
    %v528 = vpop.f32.mrb[0].mxu0
    %529 = vdwg.mxu0
    %v530 = vmul.f32 %v468, %v468
    %v531 = vmul.f32 %v471, %v471
    %v532 = vmul.f32 %v476, %v476
    %v533 = vmul.f32 %v479, %v479
    %v534 = vmul.f32 %v484, %v484
    %v535 = vmul.f32 %v487, %v487
    %v536 = vmul.f32 %v492, %v492
    %v537 = vmul.f32 %v495, %v495
    %v538 = vmul.f32 %v500, %v500
    %v539 = vmul.f32 %v503, %v503
    %v540 = vmul.f32 %v508, %v508
    %v541 = vmul.f32 %v511, %v511
    %v542 = vmul.f32 %v516, %v516
    %v543 = vmul.f32 %v519, %v519
    %v544 = vmul.f32 %v524, %v524
    %v545 = vmul.f32 %v527, %v527
    %546 = vadd.xlane.f32.xlu0 %v530
    %v547 = vpop.xlane.xlu0 %546
    %548 = vadd.xlane.f32.xlu0 %v531
    %v549 = vpop.xlane.xlu0 %548
    %550 = vadd.xlane.f32.xlu0 %v532
    %v551 = vpop.xlane.xlu0 %550
    %552 = vadd.xlane.f32.xlu0 %v533
    %v553 = vpop.xlane.xlu0 %552
    %554 = vadd.xlane.f32.xlu0 %v534
    %v555 = vpop.xlane.xlu0 %554
    %556 = vadd.xlane.f32.xlu0 %v535
    %v557 = vpop.xlane.xlu0 %556
    %558 = vadd.xlane.f32.xlu0 %v536
    %v559 = vpop.xlane.xlu0 %558
    %560 = vadd.xlane.f32.xlu0 %v537
    %v561 = vpop.xlane.xlu0 %560
    %562 = vadd.xlane.f32.xlu0 %v538
    %v563 = vpop.xlane.xlu0 %562
    %564 = vadd.xlane.f32.xlu0 %v539
    %v565 = vpop.xlane.xlu0 %564
    %566 = vadd.xlane.f32.xlu0 %v540
    %v567 = vpop.xlane.xlu0 %566
    %568 = vadd.xlane.f32.xlu0 %v541
    %v569 = vpop.xlane.xlu0 %568
    %570 = vadd.xlane.f32.xlu0 %v542
    %v571 = vpop.xlane.xlu0 %570
    %572 = vadd.xlane.f32.xlu0 %v543
    %v573 = vpop.xlane.xlu0 %572
    %574 = vadd.xlane.f32.xlu0 %v544
    %v575 = vpop.xlane.xlu0 %574
    %576 = vadd.xlane.f32.xlu0 %v545
    %v577 = vpop.xlane.xlu0 %576
    %v578 = vmax.f32 %v547, 1e-24
    %v579 = vmax.f32 %v549, 1e-24
    %v580 = vmax.f32 %v551, 1e-24
    %v581 = vmax.f32 %v553, 1e-24
    %v582 = vmax.f32 %v555, 1e-24
    %v583 = vmax.f32 %v557, 1e-24
    %v584 = vmax.f32 %v559, 1e-24
    %v585 = vmax.f32 %v561, 1e-24
    %v586 = vmax.f32 %v563, 1e-24
    %v587 = vmax.f32 %v565, 1e-24
    %v588 = vmax.f32 %v567, 1e-24
    %v589 = vmax.f32 %v569, 1e-24
    %v590 = vmax.f32 %v571, 1e-24
    %v591 = vmax.f32 %v573, 1e-24
    %v592 = vmax.f32 %v575, 1e-24
    %v593 = vmax.f32 %v577, 1e-24
    %v594 = vrsqrt.pop %v578
    %v595 = vrsqrt.pop %v579
    %v596 = vrsqrt.pop %v580
    %v597 = vrsqrt.pop %v581
    %v598 = vrsqrt.pop %v582
    %v599 = vrsqrt.pop %v583
    %v600 = vrsqrt.pop %v584
    %v601 = vrsqrt.pop %v585
    %v602 = vrsqrt.pop %v586
    %v603 = vrsqrt.pop %v587
    %v604 = vrsqrt.pop %v588
    %v605 = vrsqrt.pop %v589
    %v606 = vrsqrt.pop %v590
    %v607 = vrsqrt.pop %v591
    %v608 = vrsqrt.pop %v592
    %v609 = vrsqrt.pop %v593
    %v610 = vmul.f32 %v468, %v594
    %v611 = vmul.f32 %v471, %v595
    %v612 = vmul.f32 %v476, %v596
    %v613 = vmul.f32 %v479, %v597
    %v614 = vmul.f32 %v484, %v598
    %v615 = vmul.f32 %v487, %v599
    %v616 = vmul.f32 %v492, %v600
    %v617 = vmul.f32 %v495, %v601
    %v618 = vmul.f32 %v500, %v602
    %v619 = vmul.f32 %v503, %v603
    %v620 = vmul.f32 %v508, %v604
    %v621 = vmul.f32 %v511, %v605
    %v622 = vmul.f32 %v516, %v606
    %v623 = vmul.f32 %v519, %v607
    %v624 = vmul.f32 %v524, %v608
    %v625 = vmul.f32 %v527, %v609
    %626 = vst [vmem:[#allocation12] sm:$0xff] %v610
    %627 = vst [vmem:[#allocation12 + $0x8] sm:$0xff] %v611
    %628 = vst [vmem:[#allocation12 + $0x10] sm:$0xff] %v612
    %629 = vst [vmem:[#allocation12 + $0x18] sm:$0xff] %v613
    %630 = vst [vmem:[#allocation12 + $0x20] sm:$0xff] %v614
    %631 = vst [vmem:[#allocation12 + $0x28] sm:$0xff] %v615
    %632 = vst [vmem:[#allocation12 + $0x30] sm:$0xff] %v616
    %633 = vst [vmem:[#allocation12 + $0x38] sm:$0xff] %v617
    %634 = vst [vmem:[#allocation12 + $0x40] sm:$0xff] %v618
    %635 = vst [vmem:[#allocation12 + $0x48] sm:$0xff] %v619
    %636 = vst [vmem:[#allocation12 + $0x50] sm:$0xff] %v620
    %637 = vst [vmem:[#allocation12 + $0x58] sm:$0xff] %v621
    %638 = vst [vmem:[#allocation12 + $0x60] sm:$0xff] %v622
    %639 = vst [vmem:[#allocation12 + $0x68] sm:$0xff] %v623
    %640 = vst [vmem:[#allocation12 + $0x70] sm:$0xff] %v624
    %641 = vst [vmem:[#allocation12 + $0x78] sm:$0xff] %v625
    %v642 = vld [vmem:[#allocation13] sm:$0xff]
    %v643 = vld [vmem:[#allocation13 + $0x8] sm:$0xff]
    %v644 = vld [vmem:[#allocation13 + $0x10] sm:$0xff]
    %v645 = vld [vmem:[#allocation13 + $0x18] sm:$0xff]
    %v646 = vld [vmem:[#allocation13 + $0x20] sm:$0xff]
    %v647 = vld [vmem:[#allocation13 + $0x28] sm:$0xff]
    %v648 = vld [vmem:[#allocation13 + $0x30] sm:$0xff]
    %v649 = vld [vmem:[#allocation13 + $0x38] sm:$0xff]
    %v650 = vld [vmem:[#allocation13 + $0x40] sm:$0xff]
    %v651 = vld [vmem:[#allocation13 + $0x48] sm:$0xff]
    %v652 = vld [vmem:[#allocation13 + $0x50] sm:$0xff]
    %v653 = vld [vmem:[#allocation13 + $0x58] sm:$0xff]
    %v654 = vld [vmem:[#allocation13 + $0x60] sm:$0xff]
    %v655 = vld [vmem:[#allocation13 + $0x68] sm:$0xff]
    %v656 = vld [vmem:[#allocation13 + $0x70] sm:$0xff]
    %v657 = vld [vmem:[#allocation13 + $0x78] sm:$0xff]
    %v658 = vmul.f32 %v610, 14.285714
    %v659 = vmul.f32 %v611, 14.285714
    %v660 = vmul.f32 %v612, 14.285714
    %v661 = vmul.f32 %v613, 14.285714
    %v662 = vmul.f32 %v614, 14.285714
    %v663 = vmul.f32 %v615, 14.285714
    %v664 = vmul.f32 %v616, 14.285714
    %v665 = vmul.f32 %v617, 14.285714
    %v666 = vmul.f32 %v618, 14.285714
    %v667 = vmul.f32 %v619, 14.285714
    %v668 = vmul.f32 %v620, 14.285714
    %v669 = vmul.f32 %v621, 14.285714
    %v670 = vmul.f32 %v622, 14.285714
    %v671 = vmul.f32 %v623, 14.285714
    %v672 = vmul.f32 %v624, 14.285714
    %v673 = vmul.f32 %v625, 14.285714
    %674 = vmatprep.subr.mxu0 0.0
    %675 = vmatpush1.xpose.msra.mxu0 %v642
    %676 = vmatprep.subr.mxu0 0.0
    %677 = vmatpush1.xpose.msra.mxu0 %v643
    %678 = vmatprep.subr.mxu0 0.0
    %679 = vmatpush1.xpose.msra.mxu0 %v644
    %680 = vmatprep.subr.mxu0 0.0
    %681 = vmatpush1.xpose.msra.mxu0 %v645
    %682 = vmatprep.subr.mxu0 0.0
    %683 = vmatpush1.xpose.msra.mxu0 %v646
    %684 = vmatprep.subr.mxu0 0.0
    %685 = vmatpush1.xpose.msra.mxu0 %v647
    %686 = vmatprep.subr.mxu0 0.0
    %687 = vmatpush1.xpose.msra.mxu0 %v648
    %688 = vmatprep.subr.mxu0 0.0
    %689 = vmatpush1.xpose.msra.mxu0 %v649
    %690 = vmatprep.subr.mxu0 0.0
    %691 = vmatpush1.xpose.msra.mxu0 %v650
    %692 = vmatprep.subr.mxu0 0.0
    %693 = vmatpush1.xpose.msra.mxu0 %v651
    %694 = vmatprep.subr.mxu0 0.0
    %695 = vmatpush1.xpose.msra.mxu0 %v652
    %696 = vmatprep.subr.mxu0 0.0
    %697 = vmatpush1.xpose.msra.mxu0 %v653
    %698 = vmatprep.subr.mxu0 0.0
    %699 = vmatpush1.xpose.msra.mxu0 %v654
    %700 = vmatprep.subr.mxu0 0.0
    %701 = vmatpush1.xpose.msra.mxu0 %v655
    %702 = vmatprep.subr.mxu0 0.0
    %703 = vmatpush1.xpose.msra.mxu0 %v656
    %704 = vmatprep.subr.mxu0 0.0
    %705 = vmatpush1.xpose.msra.mxu0 %v657
    %706 = vmatprep.subr.mxu0 0.0
    %707 = vmatpush1.xpose.msra.mxu0 0.0
    %708 = vmatprep.subr.mxu0 0.0
    %709 = vmatpush1.xpose.msra.mxu0 0.0
    %710 = vmatprep.subr.mxu0 0.0
    %711 = vmatpush1.xpose.msra.mxu0 0.0
    %712 = vmatprep.subr.mxu0 0.0
    %713 = vmatpush1.xpose.msra.mxu0 0.0
    %714 = vmatprep.subr.mxu0 0.0
    %715 = vmatpush1.xpose.msra.mxu0 0.0
    %716 = vmatprep.subr.mxu0 0.0
    %717 = vmatpush1.xpose.msra.mxu0 0.0
    %718 = vmatprep.subr.mxu0 0.0
    %719 = vmatpush1.xpose.msra.mxu0 0.0
    %720 = vmatprep.subr.mxu0 0.0
    %721 = vmatpush1.xpose.msra.mxu0 0.0
    %722 = vmatprep.subr.mxu0 0.0
    %723 = vmatpush1.xpose.msra.mxu0 0.0
    %724 = vmatprep.subr.mxu0 0.0
    %725 = vmatpush1.xpose.msra.mxu0 0.0
    %726 = vmatprep.subr.mxu0 0.0
    %727 = vmatpush1.xpose.msra.mxu0 0.0
    %728 = vmatprep.subr.mxu0 0.0
    %729 = vmatpush1.xpose.msra.mxu0 0.0
    %730 = vmatprep.subr.mxu0 0.0
    %731 = vmatpush1.xpose.msra.mxu0 0.0
    %732 = vmatprep.subr.mxu0 0.0
    %733 = vmatpush1.xpose.msra.mxu0 0.0
    %734 = vmatprep.subr.mxu0 0.0
    %735 = vmatpush1.xpose.msra.mxu0 0.0
    %736 = vmatprep.subr.mxu0 0.0
    %737 = vmatpush1.xpose.msra.mxu0 0.0
    %738 = vmatprep.mubr.f32.mxu0 0.0
    %739 = vmatmul.mubr.f32.gmra.mrb[0].mxu0 %v658
    %v740 = vpop.f32.mrb[0].mxu0
    %v741 = vadd.f32 0.0, %v740
    %v742 = vpop.f32.mrb[0].mxu0
    %743 = vmatprep.mubr.f32.mxu0 0.0
    %744 = vmatmul.mubr.f32.gmra.mrb[0].mxu0 %v659
    %v745 = vpop.f32.mrb[0].mxu0
    %v746 = vadd.f32 0.0, %v745
    %v747 = vpop.f32.mrb[0].mxu0
    %748 = vmatprep.mubr.f32.mxu0 0.0
    %749 = vmatmul.mubr.f32.gmra.mrb[0].mxu0 %v660
    %v750 = vpop.f32.mrb[0].mxu0
    %v751 = vadd.f32 0.0, %v750
    %v752 = vpop.f32.mrb[0].mxu0
    %753 = vmatprep.mubr.f32.mxu0 0.0
    %754 = vmatmul.mubr.f32.gmra.mrb[0].mxu0 %v661
    %v755 = vpop.f32.mrb[0].mxu0
    %v756 = vadd.f32 0.0, %v755
    %v757 = vpop.f32.mrb[0].mxu0
    %758 = vmatprep.mubr.f32.mxu0 0.0
    %759 = vmatmul.mubr.f32.gmra.mrb[0].mxu0 %v662
    %v760 = vpop.f32.mrb[0].mxu0
    %v761 = vadd.f32 0.0, %v760
    %v762 = vpop.f32.mrb[0].mxu0
    %763 = vmatprep.mubr.f32.mxu0 0.0
    %764 = vmatmul.mubr.f32.gmra.mrb[0].mxu0 %v663
    %v765 = vpop.f32.mrb[0].mxu0
    %v766 = vadd.f32 0.0, %v765
    %v767 = vpop.f32.mrb[0].mxu0
    %768 = vmatprep.mubr.f32.mxu0 0.0
    %769 = vmatmul.mubr.f32.gmra.mrb[0].mxu0 %v664
    %v770 = vpop.f32.mrb[0].mxu0
    %v771 = vadd.f32 0.0, %v770
    %v772 = vpop.f32.mrb[0].mxu0
    %773 = vmatprep.mubr.f32.mxu0 0.0
    %774 = vmatmul.mubr.f32.gmra.mrb[0].mxu0 %v665
    %v775 = vpop.f32.mrb[0].mxu0
    %v776 = vadd.f32 0.0, %v775
    %v777 = vpop.f32.mrb[0].mxu0
    %778 = vmatprep.mubr.f32.mxu0 0.0
    %779 = vmatmul.mubr.f32.gmra.mrb[0].mxu0 %v666
    %v780 = vpop.f32.mrb[0].mxu0
    %v781 = vadd.f32 0.0, %v780
    %v782 = vpop.f32.mrb[0].mxu0
    %783 = vmatprep.mubr.f32.mxu0 0.0
    %784 = vmatmul.mubr.f32.gmra.mrb[0].mxu0 %v667
    %v785 = vpop.f32.mrb[0].mxu0
    %v786 = vadd.f32 0.0, %v785
    %v787 = vpop.f32.mrb[0].mxu0
    %788 = vmatprep.mubr.f32.mxu0 0.0
    %789 = vmatmul.mubr.f32.gmra.mrb[0].mxu0 %v668
    %v790 = vpop.f32.mrb[0].mxu0
    %v791 = vadd.f32 0.0, %v790
    %v792 = vpop.f32.mrb[0].mxu0
    %793 = vmatprep.mubr.f32.mxu0 0.0
    %794 = vmatmul.mubr.f32.gmra.mrb[0].mxu0 %v669
    %v795 = vpop.f32.mrb[0].mxu0
    %v796 = vadd.f32 0.0, %v795
    %v797 = vpop.f32.mrb[0].mxu0
    %798 = vmatprep.mubr.f32.mxu0 0.0
    %799 = vmatmul.mubr.f32.gmra.mrb[0].mxu0 %v670
    %v800 = vpop.f32.mrb[0].mxu0
    %v801 = vadd.f32 0.0, %v800
    %v802 = vpop.f32.mrb[0].mxu0
    %803 = vmatprep.mubr.f32.mxu0 0.0
    %804 = vmatmul.mubr.f32.gmra.mrb[0].mxu0 %v671
    %v805 = vpop.f32.mrb[0].mxu0
    %v806 = vadd.f32 0.0, %v805
    %v807 = vpop.f32.mrb[0].mxu0
    %808 = vmatprep.mubr.f32.mxu0 0.0
    %809 = vmatmul.mubr.f32.gmra.mrb[0].mxu0 %v672
    %v810 = vpop.f32.mrb[0].mxu0
    %v811 = vadd.f32 0.0, %v810
    %v812 = vpop.f32.mrb[0].mxu0
    %813 = vmatprep.mubr.f32.mxu0 0.0
    %814 = vmatmul.mubr.f32.gmra.mrb[0].mxu0 %v673
    %v815 = vpop.f32.mrb[0].mxu0
    %v816 = vadd.f32 0.0, %v815
    %v817 = vpop.f32.mrb[0].mxu0
    %818 = vdwg.mxu0
    %819 = vmax.xlane.f32.xlu0 %v741
    %v820 = vpop.xlane.xlu0 %819
    %821 = vmax.xlane.f32.xlu0 %v746
    %v822 = vpop.xlane.xlu0 %821
    %823 = vmax.xlane.f32.xlu0 %v751
    %v824 = vpop.xlane.xlu0 %823
    %825 = vmax.xlane.f32.xlu0 %v756
    %v826 = vpop.xlane.xlu0 %825
    %827 = vmax.xlane.f32.xlu0 %v761
    %v828 = vpop.xlane.xlu0 %827
    %829 = vmax.xlane.f32.xlu0 %v766
    %v830 = vpop.xlane.xlu0 %829
    %831 = vmax.xlane.f32.xlu0 %v771
    %v832 = vpop.xlane.xlu0 %831
    %833 = vmax.xlane.f32.xlu0 %v776
    %v834 = vpop.xlane.xlu0 %833
    %835 = vmax.xlane.f32.xlu0 %v781
    %v836 = vpop.xlane.xlu0 %835
    %837 = vmax.xlane.f32.xlu0 %v786
    %v838 = vpop.xlane.xlu0 %837
    %839 = vmax.xlane.f32.xlu0 %v791
    %v840 = vpop.xlane.xlu0 %839
    %841 = vmax.xlane.f32.xlu0 %v796
    %v842 = vpop.xlane.xlu0 %841
    %843 = vmax.xlane.f32.xlu0 %v801
    %v844 = vpop.xlane.xlu0 %843
    %845 = vmax.xlane.f32.xlu0 %v806
    %v846 = vpop.xlane.xlu0 %845
    %847 = vmax.xlane.f32.xlu0 %v811
    %v848 = vpop.xlane.xlu0 %847
    %849 = vmax.xlane.f32.xlu0 %v816
    %v850 = vpop.xlane.xlu0 %849
    %v851 = vsub.f32 %v741, %v820
    %v852 = vsub.f32 %v746, %v822
    %v853 = vsub.f32 %v751, %v824
    %v854 = vsub.f32 %v756, %v826
    %v855 = vsub.f32 %v761, %v828
    %v856 = vsub.f32 %v766, %v830
    %v857 = vsub.f32 %v771, %v832
    %v858 = vsub.f32 %v776, %v834
    %v859 = vsub.f32 %v781, %v836
    %v860 = vsub.f32 %v786, %v838
    %v861 = vsub.f32 %v791, %v840
    %v862 = vsub.f32 %v796, %v842
    %v863 = vsub.f32 %v801, %v844
    %v864 = vsub.f32 %v806, %v846
    %v865 = vsub.f32 %v811, %v848
    %v866 = vsub.f32 %v816, %v850
    %v867 = vmul.f32 %v851, 1.442695
    %v868 = vpow.pop %v867
    %v869 = vmul.f32 %v852, 1.442695
    %v870 = vpow.pop %v869
    %v871 = vmul.f32 %v853, 1.442695
    %v872 = vpow.pop %v871
    %v873 = vmul.f32 %v854, 1.442695
    %v874 = vpow.pop %v873
    %v875 = vmul.f32 %v855, 1.442695
    %v876 = vpow.pop %v875
    %v877 = vmul.f32 %v856, 1.442695
    %v878 = vpow.pop %v877
    %v879 = vmul.f32 %v857, 1.442695
    %v880 = vpow.pop %v879
    %v881 = vmul.f32 %v858, 1.442695
    %v882 = vpow.pop %v881
    %v883 = vmul.f32 %v859, 1.442695
    %v884 = vpow.pop %v883
    %v885 = vmul.f32 %v860, 1.442695
    %v886 = vpow.pop %v885
    %v887 = vmul.f32 %v861, 1.442695
    %v888 = vpow.pop %v887
    %v889 = vmul.f32 %v862, 1.442695
    %v890 = vpow.pop %v889
    %v891 = vmul.f32 %v863, 1.442695
    %v892 = vpow.pop %v891
    %v893 = vmul.f32 %v864, 1.442695
    %v894 = vpow.pop %v893
    %v895 = vmul.f32 %v865, 1.442695
    %v896 = vpow.pop %v895
    %v897 = vmul.f32 %v866, 1.442695
    %v898 = vpow.pop %v897
    %899 = vadd.xlane.f32.xlu0 %v868
    %v900 = vpop.xlane.xlu0 %899
    %901 = vadd.xlane.f32.xlu0 %v870
    %v902 = vpop.xlane.xlu0 %901
    %903 = vadd.xlane.f32.xlu0 %v872
    %v904 = vpop.xlane.xlu0 %903
    %905 = vadd.xlane.f32.xlu0 %v874
    %v906 = vpop.xlane.xlu0 %905
    %907 = vadd.xlane.f32.xlu0 %v876
    %v908 = vpop.xlane.xlu0 %907
    %909 = vadd.xlane.f32.xlu0 %v878
    %v910 = vpop.xlane.xlu0 %909
    %911 = vadd.xlane.f32.xlu0 %v880
    %v912 = vpop.xlane.xlu0 %911
    %913 = vadd.xlane.f32.xlu0 %v882
    %v914 = vpop.xlane.xlu0 %913
    %915 = vadd.xlane.f32.xlu0 %v884
    %v916 = vpop.xlane.xlu0 %915
    %917 = vadd.xlane.f32.xlu0 %v886
    %v918 = vpop.xlane.xlu0 %917
    %919 = vadd.xlane.f32.xlu0 %v888
    %v920 = vpop.xlane.xlu0 %919
    %921 = vadd.xlane.f32.xlu0 %v890
    %v922 = vpop.xlane.xlu0 %921
    %923 = vadd.xlane.f32.xlu0 %v892
    %v924 = vpop.xlane.xlu0 %923
    %925 = vadd.xlane.f32.xlu0 %v894
    %v926 = vpop.xlane.xlu0 %925
    %927 = vadd.xlane.f32.xlu0 %v896
    %v928 = vpop.xlane.xlu0 %927
    %929 = vadd.xlane.f32.xlu0 %v898
    %v930 = vpop.xlane.xlu0 %929
    %v931 = vlog2.pop %v900
    %v932 = vmul.f32 %v931, 0.6931472
    %v933 = vlog2.pop %v902
    %v934 = vmul.f32 %v933, 0.6931472
    %v935 = vlog2.pop %v904
    %v936 = vmul.f32 %v935, 0.6931472
    %v937 = vlog2.pop %v906
    %v938 = vmul.f32 %v937, 0.6931472
    %v939 = vlog2.pop %v908
    %v940 = vmul.f32 %v939, 0.6931472
    %v941 = vlog2.pop %v910
    %v942 = vmul.f32 %v941, 0.6931472
    %v943 = vlog2.pop %v912
    %v944 = vmul.f32 %v943, 0.6931472
    %v945 = vlog2.pop %v914
    %v946 = vmul.f32 %v945, 0.6931472
    %v947 = vlog2.pop %v916
    %v948 = vmul.f32 %v947, 0.6931472
    %v949 = vlog2.pop %v918
    %v950 = vmul.f32 %v949, 0.6931472
    %v951 = vlog2.pop %v920
    %v952 = vmul.f32 %v951, 0.6931472
    %v953 = vlog2.pop %v922
    %v954 = vmul.f32 %v953, 0.6931472
    %v955 = vlog2.pop %v924
    %v956 = vmul.f32 %v955, 0.6931472
    %v957 = vlog2.pop %v926
    %v958 = vmul.f32 %v957, 0.6931472
    %v959 = vlog2.pop %v928
    %v960 = vmul.f32 %v959, 0.6931472
    %v961 = vlog2.pop %v930
    %v962 = vmul.f32 %v961, 0.6931472
    %v963 = vadd.f32 %v820, %v932
    %v964 = vadd.f32 %v822, %v934
    %v965 = vadd.f32 %v824, %v936
    %v966 = vadd.f32 %v826, %v938
    %v967 = vadd.f32 %v828, %v940
    %v968 = vadd.f32 %v830, %v942
    %v969 = vadd.f32 %v832, %v944
    %v970 = vadd.f32 %v834, %v946
    %v971 = vadd.f32 %v836, %v948
    %v972 = vadd.f32 %v838, %v950
    %v973 = vadd.f32 %v840, %v952
    %v974 = vadd.f32 %v842, %v954
    %v975 = vadd.f32 %v844, %v956
    %v976 = vadd.f32 %v846, %v958
    %v977 = vadd.f32 %v848, %v960
    %v978 = vadd.f32 %v850, %v962
    %s979 = sld [smem:[#allocation3]]
    %vm980 = vcmask 7168
    %v981 = vsel %vm980, %v963, 0.0
    %v982 = vsel %vm980, %v964, 0.0
    %v983 = vadd.f32 %v981, %v982
    %v984 = vsel %vm980, %v965, 0.0
    %v985 = vadd.f32 %v983, %v984
    %v986 = vsel %vm980, %v966, 0.0
    %v987 = vadd.f32 %v985, %v986
    %v988 = vsel %vm980, %v967, 0.0
    %v989 = vadd.f32 %v987, %v988
    %v990 = vsel %vm980, %v968, 0.0
    %v991 = vadd.f32 %v989, %v990
    %v992 = vsel %vm980, %v969, 0.0
    %v993 = vadd.f32 %v991, %v992
    %v994 = vsel %vm980, %v970, 0.0
    %v995 = vadd.f32 %v993, %v994
    %v996 = vsel %vm980, %v971, 0.0
    %v997 = vadd.f32 %v995, %v996
    %v998 = vsel %vm980, %v972, 0.0
    %v999 = vadd.f32 %v997, %v998
    %v1000 = vsel %vm980, %v973, 0.0
    %v1001 = vadd.f32 %v999, %v1000
    %v1002 = vsel %vm980, %v974, 0.0
    %v1003 = vadd.f32 %v1001, %v1002
    %v1004 = vsel %vm980, %v975, 0.0
    %v1005 = vadd.f32 %v1003, %v1004
    %v1006 = vsel %vm980, %v976, 0.0
    %v1007 = vadd.f32 %v1005, %v1006
    %v1008 = vsel %vm980, %v977, 0.0
    %v1009 = vadd.f32 %v1007, %v1008
    %v1010 = vsel %vm980, %v978, 0.0
    %v1011 = vadd.f32 %v1009, %v1010
    %1012 = vadd.xlane.f32.xlu0 %v1011
    %v1013 = vpop.xlane.xlu0 %1012
    %v1014 = vrot.slane %v1013, 4
    %v1015 = vadd.f32 %v1013, %v1014
    %v1016 = vrot.slane %v1015, 2
    %v1017 = vadd.f32 %v1015, %v1016
    %v1018 = vrot.slane %v1017, 1
    %v1019 = vadd.f32 %v1017, %v1018
    %s1020 = vtos %v1019
    %s1021 = sadd.f32 %s979, %s1020
    %s1022 = scalar_lea.smem [#allocation3], 0
    %1023 = sst [smem:[%s1022]] %s1021
    %s1024 = smul.u32 0, 128
    %s1025 = scalar_lea.vmem [#allocation13], %s1024
    %v1026 = vld [vmem:[%s1025] sm:$0xff]
    %v1027 = vld [vmem:[%s1025 + $0x8] sm:$0xff]
    %v1028 = vld [vmem:[%s1025 + $0x10] sm:$0xff]
    %v1029 = vld [vmem:[%s1025 + $0x18] sm:$0xff]
    %v1030 = vld [vmem:[%s1025 + $0x20] sm:$0xff]
    %v1031 = vld [vmem:[%s1025 + $0x28] sm:$0xff]
    %v1032 = vld [vmem:[%s1025 + $0x30] sm:$0xff]
    %v1033 = vld [vmem:[%s1025 + $0x38] sm:$0xff]
    %v1034 = vld [vmem:[%s1025 + $0x40] sm:$0xff]
    %v1035 = vld [vmem:[%s1025 + $0x48] sm:$0xff]
    %v1036 = vld [vmem:[%s1025 + $0x50] sm:$0xff]
    %v1037 = vld [vmem:[%s1025 + $0x58] sm:$0xff]
    %v1038 = vld [vmem:[%s1025 + $0x60] sm:$0xff]
    %v1039 = vld [vmem:[%s1025 + $0x68] sm:$0xff]
    %v1040 = vld [vmem:[%s1025 + $0x70] sm:$0xff]
    %v1041 = vld [vmem:[%s1025 + $0x78] sm:$0xff]
    %v1042 = vmul.f32 %v658, %v1026
    %v1043 = vmul.f32 %v659, %v1027
    %v1044 = vmul.f32 %v660, %v1028
    %v1045 = vmul.f32 %v661, %v1029
    %v1046 = vmul.f32 %v662, %v1030
    %v1047 = vmul.f32 %v663, %v1031
    %v1048 = vmul.f32 %v664, %v1032
    %v1049 = vmul.f32 %v665, %v1033
    %v1050 = vmul.f32 %v666, %v1034
    %v1051 = vmul.f32 %v667, %v1035
    %v1052 = vmul.f32 %v668, %v1036
    %v1053 = vmul.f32 %v669, %v1037
    %v1054 = vmul.f32 %v670, %v1038
    %v1055 = vmul.f32 %v671, %v1039
    %v1056 = vmul.f32 %v672, %v1040
    %v1057 = vmul.f32 %v673, %v1041
    %1058 = vadd.xlane.f32.xlu0 %v1042
    %v1059 = vpop.xlane.xlu0 %1058
    %1060 = vadd.xlane.f32.xlu0 %v1043
    %v1061 = vpop.xlane.xlu0 %1060
    %1062 = vadd.xlane.f32.xlu0 %v1044
    %v1063 = vpop.xlane.xlu0 %1062
    %1064 = vadd.xlane.f32.xlu0 %v1045
    %v1065 = vpop.xlane.xlu0 %1064
    %1066 = vadd.xlane.f32.xlu0 %v1046
    %v1067 = vpop.xlane.xlu0 %1066
    %1068 = vadd.xlane.f32.xlu0 %v1047
    %v1069 = vpop.xlane.xlu0 %1068
    %1070 = vadd.xlane.f32.xlu0 %v1048
    %v1071 = vpop.xlane.xlu0 %1070
    %1072 = vadd.xlane.f32.xlu0 %v1049
    %v1073 = vpop.xlane.xlu0 %1072
    %1074 = vadd.xlane.f32.xlu0 %v1050
    %v1075 = vpop.xlane.xlu0 %1074
    %1076 = vadd.xlane.f32.xlu0 %v1051
    %v1077 = vpop.xlane.xlu0 %1076
    %1078 = vadd.xlane.f32.xlu0 %v1052
    %v1079 = vpop.xlane.xlu0 %1078
    %1080 = vadd.xlane.f32.xlu0 %v1053
    %v1081 = vpop.xlane.xlu0 %1080
    %1082 = vadd.xlane.f32.xlu0 %v1054
    %v1083 = vpop.xlane.xlu0 %1082
    %1084 = vadd.xlane.f32.xlu0 %v1055
    %v1085 = vpop.xlane.xlu0 %1084
    %1086 = vadd.xlane.f32.xlu0 %v1056
    %v1087 = vpop.xlane.xlu0 %1086
    %1088 = vadd.xlane.f32.xlu0 %v1057
    %v1089 = vpop.xlane.xlu0 %1088
    %s1090 = sld [smem:[#allocation4]]
    %v1091 = vsel %vm980, %v1059, 0.0
    %v1092 = vsel %vm980, %v1061, 0.0
    %v1093 = vadd.f32 %v1091, %v1092
    %v1094 = vsel %vm980, %v1063, 0.0
    %v1095 = vadd.f32 %v1093, %v1094
    %v1096 = vsel %vm980, %v1065, 0.0
    %v1097 = vadd.f32 %v1095, %v1096
    %v1098 = vsel %vm980, %v1067, 0.0
    %v1099 = vadd.f32 %v1097, %v1098
    %v1100 = vsel %vm980, %v1069, 0.0
    %v1101 = vadd.f32 %v1099, %v1100
    %v1102 = vsel %vm980, %v1071, 0.0
    %v1103 = vadd.f32 %v1101, %v1102
    %v1104 = vsel %vm980, %v1073, 0.0
    %v1105 = vadd.f32 %v1103, %v1104
    %v1106 = vsel %vm980, %v1075, 0.0
    %v1107 = vadd.f32 %v1105, %v1106
    %v1108 = vsel %vm980, %v1077, 0.0
    %v1109 = vadd.f32 %v1107, %v1108
    %v1110 = vsel %vm980, %v1079, 0.0
    %v1111 = vadd.f32 %v1109, %v1110
    %v1112 = vsel %vm980, %v1081, 0.0
    %v1113 = vadd.f32 %v1111, %v1112
    %v1114 = vsel %vm980, %v1083, 0.0
    %v1115 = vadd.f32 %v1113, %v1114
    %v1116 = vsel %vm980, %v1085, 0.0
    %v1117 = vadd.f32 %v1115, %v1116
    %v1118 = vsel %vm980, %v1087, 0.0
    %v1119 = vadd.f32 %v1117, %v1118
    %v1120 = vsel %vm980, %v1089, 0.0
    %v1121 = vadd.f32 %v1119, %v1120
    %1122 = vadd.xlane.f32.xlu0 %v1121
    %v1123 = vpop.xlane.xlu0 %1122
    %v1124 = vrot.slane %v1123, 4
    %v1125 = vadd.f32 %v1123, %v1124
    %v1126 = vrot.slane %v1125, 2
    %v1127 = vadd.f32 %v1125, %v1126
    %v1128 = vrot.slane %v1127, 1
    %v1129 = vadd.f32 %v1127, %v1128
    %s1130 = vtos %v1129
    %s1131 = sadd.f32 %s1090, %s1130
    %s1132 = scalar_lea.smem [#allocation4], 0
    %1133 = sst [smem:[%s1132]] %s1131
    %v1134 = vsub.f32 %v820, 14.285714
    %v1135 = vsub.f32 %v822, 14.285714
    %v1136 = vsub.f32 %v824, 14.285714
    %v1137 = vsub.f32 %v826, 14.285714
    %v1138 = vsub.f32 %v828, 14.285714
    %v1139 = vsub.f32 %v830, 14.285714
    %v1140 = vsub.f32 %v832, 14.285714
    %v1141 = vsub.f32 %v834, 14.285714
    %v1142 = vsub.f32 %v836, 14.285714
    %v1143 = vsub.f32 %v838, 14.285714
    %v1144 = vsub.f32 %v840, 14.285714
    %v1145 = vsub.f32 %v842, 14.285714
    %v1146 = vsub.f32 %v844, 14.285714
    %v1147 = vsub.f32 %v846, 14.285714
    %v1148 = vsub.f32 %v848, 14.285714
    %v1149 = vsub.f32 %v850, 14.285714
    %v1150 = vmul.f32 %v1134, 1.442695
    %v1151 = vpow.pop %v1150
    %v1152 = vmul.f32 %v1135, 1.442695
    %v1153 = vpow.pop %v1152
    %v1154 = vmul.f32 %v1136, 1.442695
    %v1155 = vpow.pop %v1154
    %v1156 = vmul.f32 %v1137, 1.442695
    %v1157 = vpow.pop %v1156
    %v1158 = vmul.f32 %v1138, 1.442695
    %v1159 = vpow.pop %v1158
    %v1160 = vmul.f32 %v1139, 1.442695
    %v1161 = vpow.pop %v1160
    %v1162 = vmul.f32 %v1140, 1.442695
    %v1163 = vpow.pop %v1162
    %v1164 = vmul.f32 %v1141, 1.442695
    %v1165 = vpow.pop %v1164
    %v1166 = vmul.f32 %v1142, 1.442695
    %v1167 = vpow.pop %v1166
    %v1168 = vmul.f32 %v1143, 1.442695
    %v1169 = vpow.pop %v1168
    %v1170 = vmul.f32 %v1144, 1.442695
    %v1171 = vpow.pop %v1170
    %v1172 = vmul.f32 %v1145, 1.442695
    %v1173 = vpow.pop %v1172
    %v1174 = vmul.f32 %v1146, 1.442695
    %v1175 = vpow.pop %v1174
    %v1176 = vmul.f32 %v1147, 1.442695
    %v1177 = vpow.pop %v1176
    %v1178 = vmul.f32 %v1148, 1.442695
    %v1179 = vpow.pop %v1178
    %v1180 = vmul.f32 %v1149, 1.442695
    %v1181 = vpow.pop %v1180
    %v1182 = vld [vmem:[#allocation2] sm:$0x1]
    %v1183 = vmul.f32 %v868, %v1151
    %v1184 = vmul.f32 %v870, %v1153
    %v1185 = vmul.f32 %v872, %v1155
    %v1186 = vmul.f32 %v874, %v1157
    %v1187 = vmul.f32 %v876, %v1159
    %v1188 = vmul.f32 %v878, %v1161
    %v1189 = vmul.f32 %v880, %v1163
    %v1190 = vmul.f32 %v882, %v1165
    %v1191 = vmul.f32 %v884, %v1167
    %v1192 = vmul.f32 %v886, %v1169
    %v1193 = vmul.f32 %v888, %v1171
    %v1194 = vmul.f32 %v890, %v1173
    %v1195 = vmul.f32 %v892, %v1175
    %v1196 = vmul.f32 %v894, %v1177
    %v1197 = vmul.f32 %v896, %v1179
    %v1198 = vmul.f32 %v898, %v1181
    %v1199 = vadd.f32 %v1183, %v1184
    %v1200 = vadd.f32 %v1199, %v1185
    %v1201 = vadd.f32 %v1200, %v1186
    %v1202 = vadd.f32 %v1201, %v1187
    %v1203 = vadd.f32 %v1202, %v1188
    %v1204 = vadd.f32 %v1203, %v1189
    %v1205 = vadd.f32 %v1204, %v1190
    %v1206 = vadd.f32 %v1205, %v1191
    %v1207 = vadd.f32 %v1206, %v1192
    %v1208 = vadd.f32 %v1207, %v1193
    %v1209 = vadd.f32 %v1208, %v1194
    %v1210 = vadd.f32 %v1209, %v1195
    %v1211 = vadd.f32 %v1210, %v1196
    %v1212 = vadd.f32 %v1211, %v1197
    %v1213 = vadd.f32 %v1212, %v1198
    %v1214 = vrot.slane %v1213, 4
    %v1215 = vadd.f32 %v1213, %v1214
    %v1216 = vrot.slane %v1215, 2
    %v1217 = vadd.f32 %v1215, %v1216
    %v1218 = vrot.slane %v1217, 1
    %v1219 = vadd.f32 %v1217, %v1218
    %v1220 = vadd.f32 %v1182, %v1219
    %1221 = vst [vmem:[#allocation2] sm:$0x1] %v1220
    // Predicated region
    $region34: #{tpu_custom_call.1} parent=1 // pred_check
      %p1222 = pneg %p65
    $region35: #{tpu_custom_call.1} parent=1 // pred_check_branch
      %1224 = sbr.rel (%p1222) target = $region37
    $region36: #{tpu_custom_call.1} parent=1 // pred_region
      %v1225 = vld [vmem:[#allocation2] sm:$0x1]
      %v1226 = vlog2.pop %v1225
      %v1227 = vmul.f32 %v1226, 0.6931472
      %v1228 = vadd.f32 %v1227, 14.285714
      %s1229 = sld [smem:[#allocation3]]
      %s1230 = smul.f32 %s1229, 0.0078125
      %vm1231 = vcmask 1040384
      %v1232 = vsel %vm1231, %v1228, 0.0
      %1233 = vadd.xlane.f32.xlu0 %v1232
      %v1234 = vpop.xlane.xlu0 %1233
      %v1235 = vrot.slane %v1234, 4
      %v1236 = vadd.f32 %v1234, %v1235
      %v1237 = vrot.slane %v1236, 2
      %v1238 = vadd.f32 %v1236, %v1237
      %v1239 = vrot.slane %v1238, 1
      %v1240 = vadd.f32 %v1238, %v1239
      %s1241 = vtos %v1240
      %s1242 = smul.f32 %s1241, 0.0078125
      %s1243 = sld [smem:[#allocation4]]
      %s1244 = smul.f32 %s1243, 0.0078125
      %s1245 = sadd.f32 %s1230, %s1242
      %s1246 = smul.f32 %s1245, 0.5
      %s1247 = ssub.f32 %s1246, %s1244
      %s1248 = scalar_lea.smem [#allocation15], 0
      %1249 = sst [smem:[%s1248]] %s1247
    $region37: #{tpu_custom_call.1} parent=1 // pred_fallthru
      _
    // Predicated region
    $region38: #{tpu_custom_call.1} parent=1 // pred_check
      _
    $region39: #{tpu_custom_call.1} parent=1 // pred_check_branch
      %1251 = sbr.rel (0) target = $region41
    $region40: #{tpu_custom_call.1} parent=1 // pred_region
      %s1253 = ssub.s32 2048, 2048
      %1254 = vsyncadd [#allocation7], %s1253
      %s1255 = sshll.u32 [#allocation12], 4
      %s1256 = int_to_ptr.vmem [resolvable:$true] %s1255
      %1261 = dma.vmem_to_hbm [thread:$0]  %s1256, 2048, %s4, [#allocation7], 128, 128, 8
    $region41: #{tpu_custom_call.1} parent=1 // pred_fallthru
      _
    // Predicated region
    $region42: #{tpu_custom_call.1} parent=1 // pred_check
      _
    $region43: #{tpu_custom_call.1} parent=1 // pred_check_branch
      %1263 = sbr.rel (0) target = $region45
    $region44: #{tpu_custom_call.1} parent=1 // pred_region
      %s1265 = ssub.s32 2048, 2048
      %1266 = vsyncadd [#allocation14], %s1265
      %s1267 = sshll.u32 [#allocation13], 4
      %s1268 = int_to_ptr.vmem [resolvable:$true] %s1267
      %1273 = dma.vmem_to_hbm [thread:$0]  %s1268, 2048, %s5, [#allocation14], 128, 128, 8
    $region45: #{tpu_custom_call.1} parent=1 // pred_fallthru
      _
    // Predicated region
    $region46: #{tpu_custom_call.1} parent=1 // pred_check
      _
    $region47: #{tpu_custom_call.1} parent=1 // pred_check_branch
      %1275 = sbr.rel (0) target = $region49
    $region48: #{tpu_custom_call.1} parent=1 // pred_region
      %s1277 = ssub.s32 16, 16
      %1278 = vsyncadd [#allocation8], %s1277
      %1281 = dma.smem_to_hbm [#allocation15], 16, %s6, [#allocation8]
    $region49: #{tpu_custom_call.1} parent=1 // pred_fallthru
      _
    // Predicated region
    $region50: #{tpu_custom_call.1} parent=1 // pred_check
      _
    $region51: #{tpu_custom_call.1} parent=1 // pred_check_branch
      %1283 = sbr.rel (0) target = $region53
    $region52: #{tpu_custom_call.1} parent=1 // pred_region
      %1284 = dma.done [#allocation7], 2048
    $region53: #{tpu_custom_call.1} parent=1 // pred_fallthru
      _
    // Predicated region
    $region54: #{tpu_custom_call.1} parent=1 // pred_check
      _
    $region55: #{tpu_custom_call.1} parent=1 // pred_check_branch
      %1286 = sbr.rel (0) target = $region57
    $region56: #{tpu_custom_call.1} parent=1 // pred_region
      %1287 = dma.done [#allocation14], 2048
    $region57: #{tpu_custom_call.1} parent=1 // pred_fallthru
      _
    // Predicated region
    $region58: #{tpu_custom_call.1} parent=1 // pred_check
      _
    $region59: #{tpu_custom_call.1} parent=1 // pred_check_branch
      %1289 = sbr.rel (0) target = $region61
    $region60: #{tpu_custom_call.1} parent=1 // pred_region
      %1290 = dma.done [#allocation8], 16
    $region61: #{tpu_custom_call.1} parent=1 // pred_fallthru
      _
    %1291 = sfence
    %1292 = vsyncpa [#allocation6], 1
    %1293 = vsyncpa [#allocation10], 1
    %1294 = vsyncpa [#allocation7], 1
    %1295 = vsyncpa [#allocation14], 1
    %1296 = vsyncpa [#allocation8], 1

</llo_original>
